<compile_context>
chip_gen: v6e
topology: v6e:2x2x1
jax: 0.10.0
libtpu: 0.0.40
codegen_flags: <defaults>
</compile_context>

<pallas_src>
import jax
import jax.numpy as jnp
from jax.experimental import pallas as pl
from jax.experimental.pallas import tpu as pltpu

EPS = 1e-12
LANE = 128
SUBLANE = 8


def _round_up(x, m):
    return (x + m - 1) // m * m


def _pad2d(x, rows, cols):
    r, c = x.shape
    if r == rows and c == cols:
        return x
    return jnp.pad(x, ((0, rows - r), (0, cols - c)))


def cfvqa_introd_kernel(
    # learnable scalar `self.constant` (SMEM)
    const_ref,                                    # (1, 1) f32
    # teacher outputs (per-batch-tile VMEM blocks)
    logits_ref,                                   # (TB, A_pad)  f32
    qemb_ref,                                     # (TB, Dq_pad) bf16
    vemb_ref,                                     # (TB, Dv_pad) bf16
    # q_1 MLP params (Dq -> H -> A), bf16 weights / f32 biases
    wq1_ref, bq1_ref, wq2_ref, bq2_ref,
    # v_1 MLP params (Dv -> H -> A)
    wv1_ref, bv1_ref, wv2_ref, bv2_ref,
    # q_2 / v_2 end classifiers (A -> A)
    wqe_ref, bqe_ref, wve_ref, bve_ref,
    # four lane-dense outputs
    zqkv_ref,                                     # (TB, A_pad) f32
    cfvqa_ref,                                    # (TB, A_pad) f32
    qout_ref,                                     # (TB, A_pad) f32
    vout_ref,                                     # (TB, A_pad) f32
):
    logits = logits_ref[...]                      # already f32

    # ---- q_1 MLP: Linear -> ReLU -> Linear (bf16 operands, f32 MXU acc) ----
    h_q = jnp.dot(qemb_ref[...], wq1_ref[...],
                  preferred_element_type=jnp.float32) + bq1_ref[...]
    h_q = jnp.maximum(h_q, 0.0)
    q_pred = jnp.dot(h_q.astype(wq2_ref.dtype), wq2_ref[...],
                     preferred_element_type=jnp.float32) + bq2_ref[...]

    # ---- v_1 MLP ----
    h_v = jnp.dot(vemb_ref[...], wv1_ref[...],
                  preferred_element_type=jnp.float32) + bv1_ref[...]
    h_v = jnp.maximum(h_v, 0.0)
    v_pred = jnp.dot(h_v.astype(wv2_ref.dtype), wv2_ref[...],
                     preferred_element_type=jnp.float32) + bv2_ref[...]

    # ---- 'hm' fusion (kept in f32: EPS=1e-12 underflows in bf16) ----
    # z_qkv: all three branches factual.
    s_k = jax.nn.sigmoid(logits)
    s_q = jax.nn.sigmoid(q_pred)
    s_v = jax.nn.sigmoid(v_pred)
    z_prod = s_k * s_q * s_v
    # log(z+eps) - log1p(z) == log((z+eps)/(1+z)) -> one EUP log per element.
    z_qkv = jnp.log((z_prod + EPS) / (1.0 + z_prod))

    # z_q: only the question branch factual; k, v replaced by `constant`.
    s_c = jax.nn.sigmoid(const_ref[0, 0])
    s_c2 = s_c * s_c                              # scalar, computed once
    z_prod_q = s_c2 * s_q
    z_q = jnp.log((z_prod_q + EPS) / (1.0 + z_prod_q))

    # ---- end classifiers ----
    q_out = jnp.dot(q_pred.astype(wqe_ref.dtype), wqe_ref[...],
                    preferred_element_type=jnp.float32) + bqe_ref[...]
    v_out = jnp.dot(v_pred.astype(wve_ref.dtype), wve_ref[...],
                    preferred_element_type=jnp.float32) + bve_ref[...]

    # ---- lane-dense (A_pad = k*128) unmasked stores ----
    zqkv_ref[...] = z_qkv
    cfvqa_ref[...] = z_qkv - z_q                  # TIE
    qout_ref[...] = q_out
    vout_ref[...] = v_out


def cfvqa_introd_forward(constant, logits, q_emb, v_emb, logits_stu, params,
                         *, tile_b=None, param_dtype=jnp.bfloat16):
    """CFVQAIntroD forward hot-path in a single Pallas kernel.

    Returns a dict with the same keys as the PyTorch module's forward.
    logits_vq and logits_stu are pure pass-throughs and never enter the kernel.
    """
    f32 = jnp.float32
    B, A = logits.shape
    Dq = q_emb.shape[1]
    Dv = v_emb.shape[1]
    H = params["wq1"].shape[1]

    # Lane-dense padding of every feature axis.
    A_pad = _round_up(A, LANE)
    Dq_pad = _round_up(Dq, LANE)
    Dv_pad = _round_up(Dv, LANE)
    H_pad = _round_up(H, LANE)

    # Batch tiling: fill the MXU M dimension when the batch allows, otherwise
    # still split into >= 2 grid steps so the "parallel" axis can shard across
    # both v7x TensorCores.
    if tile_b is None:
        if B >= 256:
            tile_b = 128
        else:
            tile_b = max(SUBLANE, _round_up(pl.cdiv(B, 2), SUBLANE))
    B_pad = _round_up(B, tile_b)
    num_tiles = B_pad // tile_b

    # ---- wrapper-side padding / dtype casts ----
    logits_p = _pad2d(logits.astype(f32), B_pad, A_pad)
    qemb_p = _pad2d(q_emb, B_pad, Dq_pad).astype(param_dtype)
    vemb_p = _pad2d(v_emb, B_pad, Dv_pad).astype(param_dtype)

    wq1 = _pad2d(params["wq1"], Dq_pad, H_pad).astype(param_dtype)
    bq1 = _pad2d(params["bq1"], 1, H_pad).astype(f32)
    wq2 = _pad2d(params["wq2"], H_pad, A_pad).astype(param_dtype)
    bq2 = _pad2d(params["bq2"], 1, A_pad).astype(f32)
    wv1 = _pad2d(params["wv1"], Dv_pad, H_pad).astype(param_dtype)
    bv1 = _pad2d(params["bv1"], 1, H_pad).astype(f32)
    wv2 = _pad2d(params["wv2"], H_pad, A_pad).astype(param_dtype)
    bv2 = _pad2d(params["bv2"], 1, A_pad).astype(f32)
    wqe = _pad2d(params["wqe"], A_pad, A_pad).astype(param_dtype)
    bqe = _pad2d(params["bqe"], 1, A_pad).astype(f32)
    wve = _pad2d(params["wve"], A_pad, A_pad).astype(param_dtype)
    bve = _pad2d(params["bve"], 1, A_pad).astype(f32)

    const_arr = jnp.asarray(constant, f32).reshape(1, 1)

    # ---- explicit VMEM budget (weights assumed double-buffered for margin) ----
    bpe_w = jnp.dtype(param_dtype).itemsize
    weight_bytes = bpe_w * (Dq_pad * H_pad + Dv_pad * H_pad
                            + 2 * H_pad * A_pad + 2 * A_pad * A_pad)
    bias_bytes = 4 * (2 * H_pad + 4 * A_pad)
    in_tile_bytes = tile_b * (A_pad * 4 + (Dq_pad + Dv_pad) * bpe_w)
    out_tile_bytes = tile_b * 4 * A_pad * 4
    vmem_bytes = (2 * (weight_bytes + bias_bytes)
                  + 2 * (in_tile_bytes + out_tile_bytes)
                  + (4 << 20))
    vmem_limit = int(min(max(vmem_bytes, 32 << 20), 100 << 20))
    # TODO(synk): at real VQA sizes (A~3k) on v7x (64 MiB VMEM) the two A x A
    # end-classifier weights should be streamed from HBM / tiled over A
    # instead of held fully resident.

    # Weights / biases: constant block index across the batch grid, so Pallas
    # keeps the same resident block and does not re-issue the DMA per step.
    def bcast_spec(shape):
        return pl.BlockSpec(shape, lambda i: (0, 0))

    in_specs = [
        pl.BlockSpec(memory_space=pltpu.SMEM),              # constant (scalar)
        pl.BlockSpec((tile_b, A_pad), lambda i: (i, 0)),     # logits
        pl.BlockSpec((tile_b, Dq_pad), lambda i: (i, 0)),    # q_emb
        pl.BlockSpec((tile_b, Dv_pad), lambda i: (i, 0)),    # v_emb
        bcast_spec((Dq_pad, H_pad)), bcast_spec((1, H_pad)),  # q_1 layer 1
        bcast_spec((H_pad, A_pad)), bcast_spec((1, A_pad)),   # q_1 layer 2
        bcast_spec((Dv_pad, H_pad)), bcast_spec((1, H_pad)),  # v_1 layer 1
        bcast_spec((H_pad, A_pad)), bcast_spec((1, A_pad)),   # v_1 layer 2
        bcast_spec((A_pad, A_pad)), bcast_spec((1, A_pad)),   # q_2
        bcast_spec((A_pad, A_pad)), bcast_spec((1, A_pad)),   # v_2
    ]
    out_spec = pl.BlockSpec((tile_b, A_pad), lambda i: (i, 0))
    out_shape_one = jax.ShapeDtypeStruct((B_pad, A_pad), f32)

    z_qkv, logits_cfvqa, q_out, v_out = pl.pallas_call(
        cfvqa_introd_kernel,
        grid=(num_tiles,),
        in_specs=in_specs,
        out_specs=(out_spec, out_spec, out_spec, out_spec),
        out_shape=(out_shape_one, out_shape_one, out_shape_one, out_shape_one),
        compiler_params=pltpu.CompilerParams(
            dimension_semantics=("parallel",),
            vmem_limit_bytes=vmem_limit),
    )(
        const_arr, logits_p, qemb_p, vemb_p,
        wq1, bq1, wq2, bq2,
        wv1, bv1, wv2, bv2,
        wqe, bqe, wve, bve,
    )

    # When B == B_pad and A == A_pad these slices are no-ops.
    return {
        "logits_all": z_qkv[:B, :A],
        "logits_vq": logits,        # pass-through, never routed through the kernel
        "logits_cfvqa": logits_cfvqa[:B, :A],
        "logits_q": q_out[:B, :A],
        "logits_v": v_out[:B, :A],
        "logits_stu": logits_stu,   # pass-through
    }


def init_params(key, Dq, Dv, H, A):
    ks = jax.random.split(key, 12)
    s = 0.05
    return {
        "wq1": s * jax.random.normal(ks[0], (Dq, H), jnp.float32),
        "bq1": s * jax.random.normal(ks[1], (1, H), jnp.float32),
        "wq2": s * jax.random.normal(ks[2], (H, A), jnp.float32),
        "bq2": s * jax.random.normal(ks[3], (1, A), jnp.float32),
        "wv1": s * jax.random.normal(ks[4], (Dv, H), jnp.float32),
        "bv1": s * jax.random.normal(ks[5], (1, H), jnp.float32),
        "wv2": s * jax.random.normal(ks[6], (H, A), jnp.float32),
        "bv2": s * jax.random.normal(ks[7], (1, A), jnp.float32),
        "wqe": s * jax.random.normal(ks[8], (A, A), jnp.float32),
        "bqe": s * jax.random.normal(ks[9], (1, A), jnp.float32),
        "wve": s * jax.random.normal(ks[10], (A, A), jnp.float32),
        "bve": s * jax.random.normal(ks[11], (1, A), jnp.float32),
    }


if __name__ == "__main__":
    key = jax.random.PRNGKey(0)
    # small synthetic shapes; B=16 -> two batch tiles (grid=2, megacore-friendly)
    B, A, Dq, Dv, H = 16, 32, 48, 64, 32

    k_in = jax.random.split(key, 5)
    logits = jax.random.normal(k_in[0], (B, A), jnp.float32)       # net_out['logits']
    q_emb = jax.random.normal(k_in[1], (B, Dq), jnp.float32)       # net_out['q_emb']
    v_emb = jax.random.normal(k_in[2], (B, Dv), jnp.float32)       # net_out['v_emb']
    logits_stu = jax.random.normal(k_in[3], (B, A), jnp.float32)   # net_student(batch)['logits']
    constant = 0.0                                                 # nn.Parameter(torch.tensor(0.0))

    params = init_params(k_in[4], Dq, Dv, H, A)

    out = cfvqa_introd_forward(constant, logits, q_emb, v_emb, logits_stu, params)
    jax.block_until_ready(out)

    # Pure-JAX reference reproducing the kernel's bf16-operand / f32-accumulate math.
    bf = lambda x: x.astype(jnp.bfloat16).astype(jnp.float32)
    h_q = jnp.maximum(bf(q_emb) @ bf(params["wq1"]) + params["bq1"], 0.0)
    q_pred = bf(h_q) @ bf(params["wq2"]) + params["bq2"]
    h_v = jnp.maximum(bf(v_emb) @ bf(params["wv1"]) + params["bv1"], 0.0)
    v_pred = bf(h_v) @ bf(params["wv2"]) + params["bv2"]
    s_k, s_q, s_v = map(jax.nn.sigmoid, (logits, q_pred, v_pred))
    z = s_k * s_q * s_v
    z_qkv_ref = jnp.log(z + EPS) - jnp.log1p(z)
    s_c = jax.nn.sigmoid(jnp.float32(constant))
    zq = s_c * s_q * s_c
    z_q_ref = jnp.log(zq + EPS) - jnp.log1p(zq)
    q_out_ref = bf(q_pred) @ bf(params["wqe"]) + params["bqe"]
    v_out_ref = bf(v_pred) @ bf(params["wve"]) + params["bve"]

    tol = dict(atol=2e-3, rtol=1e-3)
    assert jnp.allclose(out["logits_all"], z_qkv_ref, **tol)
    assert jnp.allclose(out["logits_cfvqa"], z_qkv_ref - z_q_ref, **tol)
    assert jnp.allclose(out["logits_q"], q_out_ref, **tol)
    assert jnp.allclose(out["logits_v"], v_out_ref, **tol)
    assert jnp.array_equal(out["logits_vq"], logits)
    assert jnp.array_equal(out["logits_stu"], logits_stu)

    print("KERNEL_OK")
</pallas_src>

<mosaic_0001>
module attributes {stable_mosaic.version = 11 : i64} {
  func.func @cfvqa_introd_kernel(%arg0: i32, %arg1: memref<1x1xf32, #tpu.memory_space<smem>>, %arg2: memref<8x128xf32, #tpu.memory_space<vmem>>, %arg3: memref<8x128xbf16, #tpu.memory_space<vmem>>, %arg4: memref<8x128xbf16, #tpu.memory_space<vmem>>, %arg5: memref<128x128xbf16, #tpu.memory_space<vmem>>, %arg6: memref<1x128xf32, #tpu.memory_space<vmem>>, %arg7: memref<128x128xbf16, #tpu.memory_space<vmem>>, %arg8: memref<1x128xf32, #tpu.memory_space<vmem>>, %arg9: memref<128x128xbf16, #tpu.memory_space<vmem>>, %arg10: memref<1x128xf32, #tpu.memory_space<vmem>>, %arg11: memref<128x128xbf16, #tpu.memory_space<vmem>>, %arg12: memref<1x128xf32, #tpu.memory_space<vmem>>, %arg13: memref<128x128xbf16, #tpu.memory_space<vmem>>, %arg14: memref<1x128xf32, #tpu.memory_space<vmem>>, %arg15: memref<128x128xbf16, #tpu.memory_space<vmem>>, %arg16: memref<1x128xf32, #tpu.memory_space<vmem>>, %arg17: memref<8x128xf32, #tpu.memory_space<vmem>>, %arg18: memref<8x128xf32, #tpu.memory_space<vmem>>, %arg19: memref<8x128xf32, #tpu.memory_space<vmem>>, %arg20: memref<8x128xf32, #tpu.memory_space<vmem>>) attributes {dimension_semantics = [#tpu.dimension_semantics<parallel>], iteration_bounds = array<i64: 2>, scalar_prefetch = 0 : i64, scratch_operands = 0 : i64, tpu.core_type = #tpu.core_type<tc>, window_params = [{transform_indices = @transform_0, window_bounds = array<i64: 1, 1>}, {transform_indices = @transform_1, window_bounds = array<i64: 8, 128>}, {transform_indices = @transform_2, window_bounds = array<i64: 8, 128>}, {transform_indices = @transform_3, window_bounds = array<i64: 8, 128>}, {pipeline_mode = #tpu.pipeline_mode<synchronous>, transform_indices = @transform_4, window_bounds = array<i64: 128, 128>}, {pipeline_mode = #tpu.pipeline_mode<synchronous>, transform_indices = @transform_5, window_bounds = array<i64: 1, 128>}, {pipeline_mode = #tpu.pipeline_mode<synchronous>, transform_indices = @transform_6, window_bounds = array<i64: 128, 128>}, {pipeline_mode = #tpu.pipeline_mode<synchronous>, transform_indices = @transform_7, window_bounds = array<i64: 1, 128>}, {pipeline_mode = #tpu.pipeline_mode<synchronous>, transform_indices = @transform_8, window_bounds = array<i64: 128, 128>}, {pipeline_mode = #tpu.pipeline_mode<synchronous>, transform_indices = @transform_9, window_bounds = array<i64: 1, 128>}, {pipeline_mode = #tpu.pipeline_mode<synchronous>, transform_indices = @transform_10, window_bounds = array<i64: 128, 128>}, {pipeline_mode = #tpu.pipeline_mode<synchronous>, transform_indices = @transform_11, window_bounds = array<i64: 1, 128>}, {pipeline_mode = #tpu.pipeline_mode<synchronous>, transform_indices = @transform_12, window_bounds = array<i64: 128, 128>}, {pipeline_mode = #tpu.pipeline_mode<synchronous>, transform_indices = @transform_13, window_bounds = array<i64: 1, 128>}, {pipeline_mode = #tpu.pipeline_mode<synchronous>, transform_indices = @transform_14, window_bounds = array<i64: 128, 128>}, {pipeline_mode = #tpu.pipeline_mode<synchronous>, transform_indices = @transform_15, window_bounds = array<i64: 1, 128>}, {transform_indices = @transform_16, window_bounds = array<i64: 8, 128>}, {transform_indices = @transform_17, window_bounds = array<i64: 8, 128>}, {transform_indices = @transform_18, window_bounds = array<i64: 8, 128>}, {transform_indices = @transform_19, window_bounds = array<i64: 8, 128>}]} {
    %c0 = arith.constant 0 : index
    %c0_0 = arith.constant 0 : index
    %0 = vector.load %arg2[%c0, %c0_0] : memref<8x128xf32, #tpu.memory_space<vmem>>, vector<8x128xf32>
    %c0_1 = arith.constant 0 : index
    %c0_2 = arith.constant 0 : index
    %1 = vector.load %arg3[%c0_1, %c0_2] : memref<8x128xbf16, #tpu.memory_space<vmem>>, vector<8x128xbf16>
    %c0_3 = arith.constant 0 : index
    %c0_4 = arith.constant 0 : index
    %2 = vector.load %arg5[%c0_3, %c0_4] : memref<128x128xbf16, #tpu.memory_space<vmem>>, vector<128x128xbf16>
    %cst = arith.constant dense<0.000000e+00> : vector<8x128xf32>
    %3 = tpu.matmul %1, %2, %cst {dimension_numbers = #tpu.dot_dimension_numbers<[1], [0], [0], [1], [0, 0, 1, 1], [], []>} : vector<8x128xbf16>, vector<128x128xbf16>, vector<8x128xf32> -> vector<8x128xf32>
    %c0_5 = arith.constant 0 : index
    %c0_6 = arith.constant 0 : index
    %4 = vector.load %arg6[%c0_5, %c0_6] : memref<1x128xf32, #tpu.memory_space<vmem>>, vector<1x128xf32>
    %5 = vector.broadcast %4 : vector<1x128xf32> to vector<8x128xf32>
    %6 = arith.addf %3, %5 : vector<8x128xf32>
    %cst_7 = arith.constant 0.000000e+00 : f32
    %7 = vector.broadcast %cst_7 : f32 to vector<8x128xf32>
    %8 = arith.maximumf %6, %7 : vector<8x128xf32>
    %9 = arith.truncf %8 : vector<8x128xf32> to vector<8x128xbf16>
    %c0_8 = arith.constant 0 : index
    %c0_9 = arith.constant 0 : index
    %10 = vector.load %arg7[%c0_8, %c0_9] : memref<128x128xbf16, #tpu.memory_space<vmem>>, vector<128x128xbf16>
    %cst_10 = arith.constant dense<0.000000e+00> : vector<8x128xf32>
    %11 = tpu.matmul %9, %10, %cst_10 {dimension_numbers = #tpu.dot_dimension_numbers<[1], [0], [0], [1], [0, 0, 1, 1], [], []>} : vector<8x128xbf16>, vector<128x128xbf16>, vector<8x128xf32> -> vector<8x128xf32>
    %c0_11 = arith.constant 0 : index
    %c0_12 = arith.constant 0 : index
    %12 = vector.load %arg8[%c0_11, %c0_12] : memref<1x128xf32, #tpu.memory_space<vmem>>, vector<1x128xf32>
    %13 = vector.broadcast %12 : vector<1x128xf32> to vector<8x128xf32>
    %14 = arith.addf %11, %13 : vector<8x128xf32>
    %c0_13 = arith.constant 0 : index
    %c0_14 = arith.constant 0 : index
    %15 = vector.load %arg4[%c0_13, %c0_14] : memref<8x128xbf16, #tpu.memory_space<vmem>>, vector<8x128xbf16>
    %c0_15 = arith.constant 0 : index
    %c0_16 = arith.constant 0 : index
    %16 = vector.load %arg9[%c0_15, %c0_16] : memref<128x128xbf16, #tpu.memory_space<vmem>>, vector<128x128xbf16>
    %cst_17 = arith.constant dense<0.000000e+00> : vector<8x128xf32>
    %17 = tpu.matmul %15, %16, %cst_17 {dimension_numbers = #tpu.dot_dimension_numbers<[1], [0], [0], [1], [0, 0, 1, 1], [], []>} : vector<8x128xbf16>, vector<128x128xbf16>, vector<8x128xf32> -> vector<8x128xf32>
    %c0_18 = arith.constant 0 : index
    %c0_19 = arith.constant 0 : index
    %18 = vector.load %arg10[%c0_18, %c0_19] : memref<1x128xf32, #tpu.memory_space<vmem>>, vector<1x128xf32>
    %19 = vector.broadcast %18 : vector<1x128xf32> to vector<8x128xf32>
    %20 = arith.addf %17, %19 : vector<8x128xf32>
    %cst_20 = arith.constant 0.000000e+00 : f32
    %21 = vector.broadcast %cst_20 : f32 to vector<8x128xf32>
    %22 = arith.maximumf %20, %21 : vector<8x128xf32>
    %23 = arith.truncf %22 : vector<8x128xf32> to vector<8x128xbf16>
    %c0_21 = arith.constant 0 : index
    %c0_22 = arith.constant 0 : index
    %24 = vector.load %arg11[%c0_21, %c0_22] : memref<128x128xbf16, #tpu.memory_space<vmem>>, vector<128x128xbf16>
    %cst_23 = arith.constant dense<0.000000e+00> : vector<8x128xf32>
    %25 = tpu.matmul %23, %24, %cst_23 {dimension_numbers = #tpu.dot_dimension_numbers<[1], [0], [0], [1], [0, 0, 1, 1], [], []>} : vector<8x128xbf16>, vector<128x128xbf16>, vector<8x128xf32> -> vector<8x128xf32>
    %c0_24 = arith.constant 0 : index
    %c0_25 = arith.constant 0 : index
    %26 = vector.load %arg12[%c0_24, %c0_25] : memref<1x128xf32, #tpu.memory_space<vmem>>, vector<1x128xf32>
    %27 = vector.broadcast %26 : vector<1x128xf32> to vector<8x128xf32>
    %28 = arith.addf %25, %27 : vector<8x128xf32>
    %29 = arith.negf %0 : vector<8x128xf32>
    %30 = math.exp %29 : vector<8x128xf32>
    %cst_26 = arith.constant 1.000000e+00 : f32
    %31 = vector.broadcast %cst_26 : f32 to vector<8x128xf32>
    %32 = arith.addf %31, %30 : vector<8x128xf32>
    %33 = arith.divf %31, %32 : vector<8x128xf32>
    %34 = arith.negf %14 : vector<8x128xf32>
    %35 = math.exp %34 : vector<8x128xf32>
    %cst_27 = arith.constant 1.000000e+00 : f32
    %36 = vector.broadcast %cst_27 : f32 to vector<8x128xf32>
    %37 = arith.addf %36, %35 : vector<8x128xf32>
    %38 = arith.divf %36, %37 : vector<8x128xf32>
    %39 = arith.negf %28 : vector<8x128xf32>
    %40 = math.exp %39 : vector<8x128xf32>
    %cst_28 = arith.constant 1.000000e+00 : f32
    %41 = vector.broadcast %cst_28 : f32 to vector<8x128xf32>
    %42 = arith.addf %41, %40 : vector<8x128xf32>
    %43 = arith.divf %41, %42 : vector<8x128xf32>
    %44 = arith.mulf %33, %38 : vector<8x128xf32>
    %45 = arith.mulf %44, %43 : vector<8x128xf32>
    %cst_29 = arith.constant 9.99999996E-13 : f32
    %46 = vector.broadcast %cst_29 : f32 to vector<8x128xf32>
    %47 = arith.addf %45, %46 : vector<8x128xf32>
    %cst_30 = arith.constant 1.000000e+00 : f32
    %48 = vector.broadcast %cst_30 : f32 to vector<8x128xf32>
    %49 = arith.addf %48, %45 : vector<8x128xf32>
    %50 = arith.divf %47, %49 : vector<8x128xf32>
    %51 = math.log %50 : vector<8x128xf32>
    %c0_31 = arith.constant 0 : index
    %c0_32 = arith.constant 0 : index
    %52 = memref.load %arg1[%c0_31, %c0_32] : memref<1x1xf32, #tpu.memory_space<smem>>
    %53 = arith.negf %52 : f32
    %54 = math.exp %53 : f32
    %cst_33 = arith.constant 1.000000e+00 : f32
    %55 = arith.addf %cst_33, %54 : f32
    %56 = arith.divf %cst_33, %55 : f32
    %57 = arith.mulf %56, %56 : f32
    %58 = vector.broadcast %57 : f32 to vector<8x128xf32>
    %59 = arith.mulf %58, %38 : vector<8x128xf32>
    %cst_34 = arith.constant 9.99999996E-13 : f32
    %60 = vector.broadcast %cst_34 : f32 to vector<8x128xf32>
    %61 = arith.addf %59, %60 : vector<8x128xf32>
    %cst_35 = arith.constant 1.000000e+00 : f32
    %62 = vector.broadcast %cst_35 : f32 to vector<8x128xf32>
    %63 = arith.addf %62, %59 : vector<8x128xf32>
    %64 = arith.divf %61, %63 : vector<8x128xf32>
    %65 = math.log %64 : vector<8x128xf32>
    %66 = arith.truncf %14 : vector<8x128xf32> to vector<8x128xbf16>
    %c0_36 = arith.constant 0 : index
    %c0_37 = arith.constant 0 : index
    %67 = vector.load %arg13[%c0_36, %c0_37] : memref<128x128xbf16, #tpu.memory_space<vmem>>, vector<128x128xbf16>
    %cst_38 = arith.constant dense<0.000000e+00> : vector<8x128xf32>
    %68 = tpu.matmul %66, %67, %cst_38 {dimension_numbers = #tpu.dot_dimension_numbers<[1], [0], [0], [1], [0, 0, 1, 1], [], []>} : vector<8x128xbf16>, vector<128x128xbf16>, vector<8x128xf32> -> vector<8x128xf32>
    %c0_39 = arith.constant 0 : index
    %c0_40 = arith.constant 0 : index
    %69 = vector.load %arg14[%c0_39, %c0_40] : memref<1x128xf32, #tpu.memory_space<vmem>>, vector<1x128xf32>
    %70 = vector.broadcast %69 : vector<1x128xf32> to vector<8x128xf32>
    %71 = arith.addf %68, %70 : vector<8x128xf32>
    %72 = arith.truncf %28 : vector<8x128xf32> to vector<8x128xbf16>
    %c0_41 = arith.constant 0 : index
    %c0_42 = arith.constant 0 : index
    %73 = vector.load %arg15[%c0_41, %c0_42] : memref<128x128xbf16, #tpu.memory_space<vmem>>, vector<128x128xbf16>
    %cst_43 = arith.constant dense<0.000000e+00> : vector<8x128xf32>
    %74 = tpu.matmul %72, %73, %cst_43 {dimension_numbers = #tpu.dot_dimension_numbers<[1], [0], [0], [1], [0, 0, 1, 1], [], []>} : vector<8x128xbf16>, vector<128x128xbf16>, vector<8x128xf32> -> vector<8x128xf32>
    %c0_44 = arith.constant 0 : index
    %c0_45 = arith.constant 0 : index
    %75 = vector.load %arg16[%c0_44, %c0_45] : memref<1x128xf32, #tpu.memory_space<vmem>>, vector<1x128xf32>
    %76 = vector.broadcast %75 : vector<1x128xf32> to vector<8x128xf32>
    %77 = arith.addf %74, %76 : vector<8x128xf32>
    %c0_46 = arith.constant 0 : index
    %c0_47 = arith.constant 0 : index
    %78 = vector.load %arg17[%c0_46, %c0_47] : memref<8x128xf32, #tpu.memory_space<vmem>>, vector<8x128xf32>
    tpu.vector_store %arg17[%c0_46, %c0_47], %51 {strides = array<i32>} : memref<8x128xf32, #tpu.memory_space<vmem>>, vector<8x128xf32>,
    %79 = arith.subf %51, %65 : vector<8x128xf32>
    %c0_48 = arith.constant 0 : index
    %c0_49 = arith.constant 0 : index
    %80 = vector.load %arg18[%c0_48, %c0_49] : memref<8x128xf32, #tpu.memory_space<vmem>>, vector<8x128xf32>
    tpu.vector_store %arg18[%c0_48, %c0_49], %79 {strides = array<i32>} : memref<8x128xf32, #tpu.memory_space<vmem>>, vector<8x128xf32>,
    %c0_50 = arith.constant 0 : index
    %c0_51 = arith.constant 0 : index
    %81 = vector.load %arg19[%c0_50, %c0_51] : memref<8x128xf32, #tpu.memory_space<vmem>>, vector<8x128xf32>
    tpu.vector_store %arg19[%c0_50, %c0_51], %71 {strides = array<i32>} : memref<8x128xf32, #tpu.memory_space<vmem>>, vector<8x128xf32>,
    %c0_52 = arith.constant 0 : index
    %c0_53 = arith.constant 0 : index
    %82 = vector.load %arg20[%c0_52, %c0_53] : memref<8x128xf32, #tpu.memory_space<vmem>>, vector<8x128xf32>
    tpu.vector_store %arg20[%c0_52, %c0_53], %77 {strides = array<i32>} : memref<8x128xf32, #tpu.memory_space<vmem>>, vector<8x128xf32>,
    return
  }
  func.func @transform_0(%arg0: i32) -> (i32, i32) {
    %c0_i32 = arith.constant 0 : i32
    %c0_i32_0 = arith.constant 0 : i32
    %c0_i32_1 = arith.constant 0 : i32
    return %c0_i32, %c0_i32_0 : i32, i32
  }
  func.func @transform_1(%arg0: i32) -> (i32, i32) {
    %c0_i32 = arith.constant 0 : i32
    %c0_i32_0 = arith.constant 0 : i32
    return %arg0, %c0_i32 : i32, i32
  }
  func.func @transform_2(%arg0: i32) -> (i32, i32) {
    %c0_i32 = arith.constant 0 : i32
    %c0_i32_0 = arith.constant 0 : i32
    return %arg0, %c0_i32 : i32, i32
  }
  func.func @transform_3(%arg0: i32) -> (i32, i32) {
    %c0_i32 = arith.constant 0 : i32
    %c0_i32_0 = arith.constant 0 : i32
    return %arg0, %c0_i32 : i32, i32
  }
  func.func @transform_4(%arg0: i32) -> (i32, i32) {
    %c0_i32 = arith.constant 0 : i32
    %c0_i32_0 = arith.constant 0 : i32
    %c0_i32_1 = arith.constant 0 : i32
    return %c0_i32, %c0_i32_0 : i32, i32
  }
  func.func @transform_5(%arg0: i32) -> (i32, i32) {
    %c0_i32 = arith.constant 0 : i32
    %c0_i32_0 = arith.constant 0 : i32
    %c0_i32_1 = arith.constant 0 : i32
    return %c0_i32, %c0_i32_0 : i32, i32
  }
  func.func @transform_6(%arg0: i32) -> (i32, i32) {
    %c0_i32 = arith.constant 0 : i32
    %c0_i32_0 = arith.constant 0 : i32
    %c0_i32_1 = arith.constant 0 : i32
    return %c0_i32, %c0_i32_0 : i32, i32
  }
  func.func @transform_7(%arg0: i32) -> (i32, i32) {
    %c0_i32 = arith.constant 0 : i32
    %c0_i32_0 = arith.constant 0 : i32
    %c0_i32_1 = arith.constant 0 : i32
    return %c0_i32, %c0_i32_0 : i32, i32
  }
  func.func @transform_8(%arg0: i32) -> (i32, i32) {
    %c0_i32 = arith.constant 0 : i32
    %c0_i32_0 = arith.constant 0 : i32
    %c0_i32_1 = arith.constant 0 : i32
    return %c0_i32, %c0_i32_0 : i32, i32
  }
  func.func @transform_9(%arg0: i32) -> (i32, i32) {
    %c0_i32 = arith.constant 0 : i32
    %c0_i32_0 = arith.constant 0 : i32
    %c0_i32_1 = arith.constant 0 : i32
    return %c0_i32, %c0_i32_0 : i32, i32
  }
  func.func @transform_10(%arg0: i32) -> (i32, i32) {
    %c0_i32 = arith.constant 0 : i32
    %c0_i32_0 = arith.constant 0 : i32
    %c0_i32_1 = arith.constant 0 : i32
    return %c0_i32, %c0_i32_0 : i32, i32
  }
  func.func @transform_11(%arg0: i32) -> (i32, i32) {
    %c0_i32 = arith.constant 0 : i32
    %c0_i32_0 = arith.constant 0 : i32
    %c0_i32_1 = arith.constant 0 : i32
    return %c0_i32, %c0_i32_0 : i32, i32
  }
  func.func @transform_12(%arg0: i32) -> (i32, i32) {
    %c0_i32 = arith.constant 0 : i32
    %c0_i32_0 = arith.constant 0 : i32
    %c0_i32_1 = arith.constant 0 : i32
    return %c0_i32, %c0_i32_0 : i32, i32
  }
  func.func @transform_13(%arg0: i32) -> (i32, i32) {
    %c0_i32 = arith.constant 0 : i32
    %c0_i32_0 = arith.constant 0 : i32
    %c0_i32_1 = arith.constant 0 : i32
    return %c0_i32, %c0_i32_0 : i32, i32
  }
  func.func @transform_14(%arg0: i32) -> (i32, i32) {
    %c0_i32 = arith.constant 0 : i32
    %c0_i32_0 = arith.constant 0 : i32
    %c0_i32_1 = arith.constant 0 : i32
    return %c0_i32, %c0_i32_0 : i32, i32
  }
  func.func @transform_15(%arg0: i32) -> (i32, i32) {
    %c0_i32 = arith.constant 0 : i32
    %c0_i32_0 = arith.constant 0 : i32
    %c0_i32_1 = arith.constant 0 : i32
    return %c0_i32, %c0_i32_0 : i32, i32
  }
  func.func @transform_16(%arg0: i32) -> (i32, i32) {
    %c0_i32 = arith.constant 0 : i32
    %c0_i32_0 = arith.constant 0 : i32
    return %arg0, %c0_i32 : i32, i32
  }
  func.func @transform_17(%arg0: i32) -> (i32, i32) {
    %c0_i32 = arith.constant 0 : i32
    %c0_i32_0 = arith.constant 0 : i32
    return %arg0, %c0_i32 : i32, i32
  }
  func.func @transform_18(%arg0: i32) -> (i32, i32) {
    %c0_i32 = arith.constant 0 : i32
    %c0_i32_0 = arith.constant 0 : i32
    return %arg0, %c0_i32 : i32, i32
  }
  func.func @transform_19(%arg0: i32) -> (i32, i32) {
    %c0_i32 = arith.constant 0 : i32
    %c0_i32_0 = arith.constant 0 : i32
    return %arg0, %c0_i32 : i32, i32
  }
}

</mosaic_0001>

<llo_original>
// kernel: tpu_custom_call.1
$region0: #{tpu_custom_call.1}
  #allocation0 [shape = 'u32[]', space=smem, size = 0x4, offset = 0x4, fixed_abs, tag = 'smem constant byte address 0x4 - core index']
  #allocation1 [shape = 'u32[144,128]{1,0:T(1,128)}', space=vmem, size = 0x12000, scoped, tag = 'internal scratch']
  #allocation2 [shape = 'f32[1,1]{1,0:T(1,128)S(6)}', space=smem, size = 0x200, scoped, tag = 'scoped memory for tpu_custom_call.1']
  %s0 = inlined_call_operand.<no memory space> [shape: f32[1,1], index: 0, kind: input, shape index: {}]
  %s1 = inlined_call_operand.hbm [shape: f32[16,128], index: 1, kind: input, shape index: {}]
  %s2 = inlined_call_operand.hbm [shape: bf16[16,128], index: 2, kind: input, shape index: {}]
  %s3 = inlined_call_operand.hbm [shape: bf16[16,128], index: 3, kind: input, shape index: {}]
  %s4 = inlined_call_operand.hbm [shape: bf16[128,128], index: 4, kind: input, shape index: {}]
  %s5 = inlined_call_operand.vmem [shape: f32[1,128], index: 5, kind: input, shape index: {}]
  %s6 = inlined_call_operand.hbm [shape: bf16[128,128], index: 6, kind: input, shape index: {}]
  %s7 = inlined_call_operand.vmem [shape: f32[1,128], index: 7, kind: input, shape index: {}]
  %s8 = inlined_call_operand.hbm [shape: bf16[128,128], index: 8, kind: input, shape index: {}]
  %s9 = inlined_call_operand.vmem [shape: f32[1,128], index: 9, kind: input, shape index: {}]
  %s10 = inlined_call_operand.hbm [shape: bf16[128,128], index: 10, kind: input, shape index: {}]
  %s11 = inlined_call_operand.vmem [shape: f32[1,128], index: 11, kind: input, shape index: {}]
  %s12 = inlined_call_operand.hbm [shape: bf16[128,128], index: 12, kind: input, shape index: {}]
  %s13 = inlined_call_operand.vmem [shape: f32[1,128], index: 13, kind: input, shape index: {}]
  %s14 = inlined_call_operand.hbm [shape: bf16[128,128], index: 14, kind: input, shape index: {}]
  %s15 = inlined_call_operand.vmem [shape: f32[1,128], index: 15, kind: input, shape index: {}]
  %s16 = inlined_call_operand.hbm [shape: f32[16,128], index: 16, kind: output, shape index: {0}]
  %s17 = inlined_call_operand.hbm [shape: f32[16,128], index: 17, kind: output, shape index: {1}]
  %s18 = inlined_call_operand.hbm [shape: f32[16,128], index: 18, kind: output, shape index: {2}]
  %s19 = inlined_call_operand.hbm [shape: f32[16,128], index: 19, kind: output, shape index: {3}]
  %20 = xla_tuple %s16, %s17, %s18, %s19
  %s21 = sld [smem:[#allocation0]]
  $region157: #{tpu_custom_call.1} parent=0
    _
  %s23 = ssub.s32 1, %s21
  %s24 = scalar_select 0, %s23, %s21
  %25 = sst [smem:[#allocation2]] %s0
  $region1: #{tpu_custom_call.1} parent=0
    #allocation3 [shape = 'u8[8192]{0}', space=vmem, size = 0x2000, scoped, tag = 'input window, operand 1']
    #allocation4 [shape = 's32[2]{0}', space=sflag, size = 0x8, scoped, tag = 'scoped memory for tpu_custom_call.1']
    #allocation5 [shape = 's32[2]{0}', space=sflag, size = 0x8, scoped, tag = 'scoped memory for tpu_custom_call.1']
    #allocation6 [shape = 'u8[4096]{0}', space=vmem, size = 0x1000, scoped, tag = 'input window, operand 2']
    #allocation7 [shape = 's32[2]{0}', space=sflag, size = 0x8, scoped, tag = 'scoped memory for tpu_custom_call.1']
    #allocation8 [shape = 'u8[4096]{0}', space=vmem, size = 0x1000, scoped, tag = 'input window, operand 3']
    #allocation9 [shape = 'u8[32768]{0}', space=vmem, size = 0x8000, scoped, tag = 'input window, operand 4, single buffered']
    #allocation10 [shape = 's32[1]{0}', space=sflag, size = 0x4, scoped, tag = 'scoped memory for tpu_custom_call.1']
    #allocation11 [shape = 'u8[32768]{0}', space=vmem, size = 0x8000, scoped, tag = 'input window, operand 6, single buffered']
    #allocation12 [shape = 'u8[32768]{0}', space=vmem, size = 0x8000, scoped, tag = 'input window, operand 8, single buffered']
    #allocation13 [shape = 's32[1]{0}', space=sflag, size = 0x4, scoped, tag = 'scoped memory for tpu_custom_call.1']
    #allocation14 [shape = 'u8[32768]{0}', space=vmem, size = 0x8000, scoped, tag = 'input window, operand 10, single buffered']
    #allocation15 [shape = 'u8[32768]{0}', space=vmem, size = 0x8000, scoped, tag = 'input window, operand 12, single buffered']
    #allocation16 [shape = 's32[1]{0}', space=sflag, size = 0x4, scoped, tag = 'scoped memory for tpu_custom_call.1']
    #allocation17 [shape = 'u8[32768]{0}', space=vmem, size = 0x8000, scoped, tag = 'input window, operand 14, single buffered']
    #allocation18 [shape = 'u8[8192]{0}', space=vmem, size = 0x2000, scoped, tag = 'output window, operand 0']
    #allocation19 [shape = 'u8[8192]{0}', space=vmem, size = 0x2000, scoped, tag = 'output window, operand 1']
    #allocation20 [shape = 's32[2]{0}', space=sflag, size = 0x8, scoped, tag = 'scoped memory for tpu_custom_call.1']
    #allocation21 [shape = 'u8[8192]{0}', space=vmem, size = 0x2000, scoped, tag = 'output window, operand 2']
    #allocation22 [shape = 'u8[8192]{0}', space=vmem, size = 0x2000, scoped, tag = 'output window, operand 3']
    #allocation23 [shape = 's32[2]{0}', space=sflag, size = 0x8, scoped, tag = 'scoped memory for tpu_custom_call.1']
    %26 = vsyncpa [#allocation4], 0
    %s27 = scalar_lea.sflag [#allocation4], 1
    %28 = vsyncpa %s27, 0
    %29 = vsyncpa [#allocation7], 0
    %s30 = scalar_lea.sflag [#allocation7], 1
    %31 = vsyncpa %s30, 0
    %32 = vsyncpa [#allocation10], 0
    %33 = vsyncpa [#allocation13], 0
    %34 = vsyncpa [#allocation16], 0
    %35 = vsyncpa [#allocation5], 0
    %s36 = scalar_lea.sflag [#allocation5], 1
    %37 = vsyncpa %s36, 0
    %38 = vsyncpa [#allocation20], 0
    %s39 = scalar_lea.sflag [#allocation20], 1
    %40 = vsyncpa %s39, 0
    %41 = vsyncpa [#allocation23], 0
    %s42 = scalar_lea.sflag [#allocation23], 1
    %43 = vsyncpa %s42, 0
    loop: start=0, step=1, limit=4
    $region2: #{tpu_custom_call.1} parent=1 // loop_pre_header
      _
    $region3: #{tpu_custom_call.1} parent=1 // loop_header
      %s45 = sphi 0, %s49
      %p46 = scmp.ge.s32.totalorder %s45, 4
      %s53 = sphi 0, %s53
      %s55 = sphi 0, %s53
      %s56 = sphi 0, %s55
      %s70 = sphi 0, %s56
      %s76 = sphi 0, %s78
      %s79 = sphi 0, %s76
      %s80 = sphi 0, %s79
      %s96 = sphi 0, %s80
      %s102 = sphi 0, %s104
      %s105 = sphi 0, %s102
      %s106 = sphi 0, %s105
      %s122 = sphi 0, %s106
      %s128 = sphi 0, %s130
      %s131 = sphi 0, %s128
      %s132 = sphi 0, %s131
      %s148 = sphi 0, %s132
      %s152 = sphi 0, %s152
      %s154 = sphi 0, %s152
      %s155 = sphi 0, %s154
      %s169 = sphi 0, %s155
      %s173 = sphi 0, %s173
      %s175 = sphi 0, %s173
      %s176 = sphi 0, %s175
      %s190 = sphi 0, %s176
      %s194 = sphi 0, %s194
      %s196 = sphi 0, %s194
      %s197 = sphi 0, %s196
      %s211 = sphi 0, %s197
      %s215 = sphi 0, %s215
      %s217 = sphi 0, %s215
      %s218 = sphi 0, %s217
      %s232 = sphi 0, %s218
      %s236 = sphi 0, %s236
      %s238 = sphi 0, %s236
      %s239 = sphi 0, %s238
      %s253 = sphi 0, %s239
      %s257 = sphi 0, %s257
      %s259 = sphi 0, %s257
      %s260 = sphi 0, %s259
      %s274 = sphi 0, %s260
      %s278 = sphi 0, %s278
      %s280 = sphi 0, %s278
      %s281 = sphi 0, %s280
      %s295 = sphi 0, %s281
      %s299 = sphi 0, %s299
      %s301 = sphi 0, %s299
      %s302 = sphi 0, %s301
      %s316 = sphi 0, %s302
      %s320 = sphi 0, %s320
      %s322 = sphi 0, %s320
      %s323 = sphi 0, %s322
      %s337 = sphi 0, %s323
      %s341 = sphi 0, %s341
      %s343 = sphi 0, %s341
      %s344 = sphi 0, %s343
      %s358 = sphi 0, %s344
      %s362 = sphi 0, %s362
      %s364 = sphi 0, %s362
      %s365 = sphi 0, %s364
      %s379 = sphi 0, %s365
      %s383 = sphi 0, %s383
      %s385 = sphi 0, %s383
      %s386 = sphi 0, %s385
      %s400 = sphi 0, %s386
      %s406 = sphi 0, %s408
      %s409 = sphi 0, %s406
      %s410 = sphi 0, %s409
      %s426 = sphi 0, %s410
      %s432 = sphi 0, %s434
      %s435 = sphi 0, %s432
      %s436 = sphi 0, %s435
      %s452 = sphi 0, %s436
      %s458 = sphi 0, %s460
      %s461 = sphi 0, %s458
      %s462 = sphi 0, %s461
      %s478 = sphi 0, %s462
      %s484 = sphi 0, %s486
      %s487 = sphi 0, %s484
      %s488 = sphi 0, %s487
      %s504 = sphi 0, %s488
    $region4: #{tpu_custom_call.1} parent=1 // loop_header_branch
      %48 = sbr.rel (%p46) target = $region8
    $region5: #{tpu_custom_call.1} parent=1 // loop_body
      %s50 = ssub.s32 %s45, 1
      %s51 = ssub.s32 %s45, 2
      %s52 = sadd.s32 %s45, 1
      %s54 = sadd.s32 %s53, 1
      %p57 = scmp.eq.s32.totalorder %s45, 1
      %p58 = scmp.ne.s32.totalorder %s53, %s55
      %p59 = scmp.eq.s32.totalorder %s45, 0
      %p60 = por %p58, %p59
      %p61 = scmp.ne.s32.totalorder %s53, %s55
      %p62 = scmp.eq.s32.totalorder %s50, 1
      %p63 = por %p61, %p62
      %p64 = scmp.ne.s32.totalorder %s55, %s56
      %p65 = scmp.eq.s32.totalorder %s50, 0
      %p66 = por %p64, %p65
      %p67 = scmp.ne.s32.totalorder %s55, %s56
      %p68 = scmp.eq.s32.totalorder %s51, 1
      %p69 = por %p67, %p68
      %p71 = scmp.ne.s32.totalorder %s56, %s70
      %p72 = scmp.eq.s32.totalorder %s51, 0
      %p73 = por %p71, %p72
      %s74 = ssub.s32 %s45, %s52
      %p75 = scmp.eq.s32.totalorder %s74, 0
      %s77 = sadd.s32 %s76, 1
      %s78 = scalar_select %p75, %s76, %s77
      %p81 = pneg %p75
      %p82 = scmp.eq.s32.totalorder %s45, 1
      %p83 = por %p81, %p82
      %p84 = scmp.ne.s32.totalorder %s76, %s79
      %p85 = scmp.eq.s32.totalorder %s45, 0
      %p86 = por %p84, %p85
      %p87 = scmp.ne.s32.totalorder %s76, %s79
      %p88 = scmp.eq.s32.totalorder %s50, 1
      %p89 = por %p87, %p88
      %p90 = scmp.ne.s32.totalorder %s79, %s80
      %p91 = scmp.eq.s32.totalorder %s50, 0
      %p92 = por %p90, %p91
      %p93 = scmp.ne.s32.totalorder %s79, %s80
      %p94 = scmp.eq.s32.totalorder %s51, 1
      %p95 = por %p93, %p94
      %p97 = scmp.ne.s32.totalorder %s80, %s96
      %p98 = scmp.eq.s32.totalorder %s51, 0
      %p99 = por %p97, %p98
      %s100 = ssub.s32 %s45, %s52
      %p101 = scmp.eq.s32.totalorder %s100, 0
      %s103 = sadd.s32 %s102, 1
      %s104 = scalar_select %p101, %s102, %s103
      %p107 = pneg %p101
      %p108 = scmp.eq.s32.totalorder %s45, 1
      %p109 = por %p107, %p108
      %p110 = scmp.ne.s32.totalorder %s102, %s105
      %p111 = scmp.eq.s32.totalorder %s45, 0
      %p112 = por %p110, %p111
      %p113 = scmp.ne.s32.totalorder %s102, %s105
      %p114 = scmp.eq.s32.totalorder %s50, 1
      %p115 = por %p113, %p114
      %p116 = scmp.ne.s32.totalorder %s105, %s106
      %p117 = scmp.eq.s32.totalorder %s50, 0
      %p118 = por %p116, %p117
      %p119 = scmp.ne.s32.totalorder %s105, %s106
      %p120 = scmp.eq.s32.totalorder %s51, 1
      %p121 = por %p119, %p120
      %p123 = scmp.ne.s32.totalorder %s106, %s122
      %p124 = scmp.eq.s32.totalorder %s51, 0
      %p125 = por %p123, %p124
      %s126 = ssub.s32 %s45, %s52
      %p127 = scmp.eq.s32.totalorder %s126, 0
      %s129 = sadd.s32 %s128, 1
      %s130 = scalar_select %p127, %s128, %s129
      %p133 = pneg %p127
      %p134 = scmp.eq.s32.totalorder %s45, 1
      %p135 = por %p133, %p134
      %p136 = scmp.ne.s32.totalorder %s128, %s131
      %p137 = scmp.eq.s32.totalorder %s45, 0
      %p138 = por %p136, %p137
      %p139 = scmp.ne.s32.totalorder %s128, %s131
      %p140 = scmp.eq.s32.totalorder %s50, 1
      %p141 = por %p139, %p140
      %p142 = scmp.ne.s32.totalorder %s131, %s132
      %p143 = scmp.eq.s32.totalorder %s50, 0
      %p144 = por %p142, %p143
      %p145 = scmp.ne.s32.totalorder %s131, %s132
      %p146 = scmp.eq.s32.totalorder %s51, 1
      %p147 = por %p145, %p146
      %p149 = scmp.ne.s32.totalorder %s132, %s148
      %p150 = scmp.eq.s32.totalorder %s51, 0
      %p151 = por %p149, %p150
      %s153 = sadd.s32 %s152, 1
      %p156 = scmp.eq.s32.totalorder %s45, 1
      %p157 = scmp.ne.s32.totalorder %s152, %s154
      %p158 = scmp.eq.s32.totalorder %s45, 0
      %p159 = por %p157, %p158
      %p160 = scmp.ne.s32.totalorder %s152, %s154
      %p161 = scmp.eq.s32.totalorder %s50, 1
      %p162 = por %p160, %p161
      %p163 = scmp.ne.s32.totalorder %s154, %s155
      %p164 = scmp.eq.s32.totalorder %s50, 0
      %p165 = por %p163, %p164
      %p166 = scmp.ne.s32.totalorder %s154, %s155
      %p167 = scmp.eq.s32.totalorder %s51, 1
      %p168 = por %p166, %p167
      %p170 = scmp.ne.s32.totalorder %s155, %s169
      %p171 = scmp.eq.s32.totalorder %s51, 0
      %p172 = por %p170, %p171
      %s174 = sadd.s32 %s173, 1
      %p177 = scmp.eq.s32.totalorder %s45, 1
      %p178 = scmp.ne.s32.totalorder %s173, %s175
      %p179 = scmp.eq.s32.totalorder %s45, 0
      %p180 = por %p178, %p179
      %p181 = scmp.ne.s32.totalorder %s173, %s175
      %p182 = scmp.eq.s32.totalorder %s50, 1
      %p183 = por %p181, %p182
      %p184 = scmp.ne.s32.totalorder %s175, %s176
      %p185 = scmp.eq.s32.totalorder %s50, 0
      %p186 = por %p184, %p185
      %p187 = scmp.ne.s32.totalorder %s175, %s176
      %p188 = scmp.eq.s32.totalorder %s51, 1
      %p189 = por %p187, %p188
      %p191 = scmp.ne.s32.totalorder %s176, %s190
      %p192 = scmp.eq.s32.totalorder %s51, 0
      %p193 = por %p191, %p192
      %s195 = sadd.s32 %s194, 1
      %p198 = scmp.eq.s32.totalorder %s45, 1
      %p199 = scmp.ne.s32.totalorder %s194, %s196
      %p200 = scmp.eq.s32.totalorder %s45, 0
      %p201 = por %p199, %p200
      %p202 = scmp.ne.s32.totalorder %s194, %s196
      %p203 = scmp.eq.s32.totalorder %s50, 1
      %p204 = por %p202, %p203
      %p205 = scmp.ne.s32.totalorder %s196, %s197
      %p206 = scmp.eq.s32.totalorder %s50, 0
      %p207 = por %p205, %p206
      %p208 = scmp.ne.s32.totalorder %s196, %s197
      %p209 = scmp.eq.s32.totalorder %s51, 1
      %p210 = por %p208, %p209
      %p212 = scmp.ne.s32.totalorder %s197, %s211
      %p213 = scmp.eq.s32.totalorder %s51, 0
      %p214 = por %p212, %p213
      %s216 = sadd.s32 %s215, 1
      %p219 = scmp.eq.s32.totalorder %s45, 1
      %p220 = scmp.ne.s32.totalorder %s215, %s217
      %p221 = scmp.eq.s32.totalorder %s45, 0
      %p222 = por %p220, %p221
      %p223 = scmp.ne.s32.totalorder %s215, %s217
      %p224 = scmp.eq.s32.totalorder %s50, 1
      %p225 = por %p223, %p224
      %p226 = scmp.ne.s32.totalorder %s217, %s218
      %p227 = scmp.eq.s32.totalorder %s50, 0
      %p228 = por %p226, %p227
      %p229 = scmp.ne.s32.totalorder %s217, %s218
      %p230 = scmp.eq.s32.totalorder %s51, 1
      %p231 = por %p229, %p230
      %p233 = scmp.ne.s32.totalorder %s218, %s232
      %p234 = scmp.eq.s32.totalorder %s51, 0
      %p235 = por %p233, %p234
      %s237 = sadd.s32 %s236, 1
      %p240 = scmp.eq.s32.totalorder %s45, 1
      %p241 = scmp.ne.s32.totalorder %s236, %s238
      %p242 = scmp.eq.s32.totalorder %s45, 0
      %p243 = por %p241, %p242
      %p244 = scmp.ne.s32.totalorder %s236, %s238
      %p245 = scmp.eq.s32.totalorder %s50, 1
      %p246 = por %p244, %p245
      %p247 = scmp.ne.s32.totalorder %s238, %s239
      %p248 = scmp.eq.s32.totalorder %s50, 0
      %p249 = por %p247, %p248
      %p250 = scmp.ne.s32.totalorder %s238, %s239
      %p251 = scmp.eq.s32.totalorder %s51, 1
      %p252 = por %p250, %p251
      %p254 = scmp.ne.s32.totalorder %s239, %s253
      %p255 = scmp.eq.s32.totalorder %s51, 0
      %p256 = por %p254, %p255
      %s258 = sadd.s32 %s257, 1
      %p261 = scmp.eq.s32.totalorder %s45, 1
      %p262 = scmp.ne.s32.totalorder %s257, %s259
      %p263 = scmp.eq.s32.totalorder %s45, 0
      %p264 = por %p262, %p263
      %p265 = scmp.ne.s32.totalorder %s257, %s259
      %p266 = scmp.eq.s32.totalorder %s50, 1
      %p267 = por %p265, %p266
      %p268 = scmp.ne.s32.totalorder %s259, %s260
      %p269 = scmp.eq.s32.totalorder %s50, 0
      %p270 = por %p268, %p269
      %p271 = scmp.ne.s32.totalorder %s259, %s260
      %p272 = scmp.eq.s32.totalorder %s51, 1
      %p273 = por %p271, %p272
      %p275 = scmp.ne.s32.totalorder %s260, %s274
      %p276 = scmp.eq.s32.totalorder %s51, 0
      %p277 = por %p275, %p276
      %s279 = sadd.s32 %s278, 1
      %p282 = scmp.eq.s32.totalorder %s45, 1
      %p283 = scmp.ne.s32.totalorder %s278, %s280
      %p284 = scmp.eq.s32.totalorder %s45, 0
      %p285 = por %p283, %p284
      %p286 = scmp.ne.s32.totalorder %s278, %s280
      %p287 = scmp.eq.s32.totalorder %s50, 1
      %p288 = por %p286, %p287
      %p289 = scmp.ne.s32.totalorder %s280, %s281
      %p290 = scmp.eq.s32.totalorder %s50, 0
      %p291 = por %p289, %p290
      %p292 = scmp.ne.s32.totalorder %s280, %s281
      %p293 = scmp.eq.s32.totalorder %s51, 1
      %p294 = por %p292, %p293
      %p296 = scmp.ne.s32.totalorder %s281, %s295
      %p297 = scmp.eq.s32.totalorder %s51, 0
      %p298 = por %p296, %p297
      %s300 = sadd.s32 %s299, 1
      %p303 = scmp.eq.s32.totalorder %s45, 1
      %p304 = scmp.ne.s32.totalorder %s299, %s301
      %p305 = scmp.eq.s32.totalorder %s45, 0
      %p306 = por %p304, %p305
      %p307 = scmp.ne.s32.totalorder %s299, %s301
      %p308 = scmp.eq.s32.totalorder %s50, 1
      %p309 = por %p307, %p308
      %p310 = scmp.ne.s32.totalorder %s301, %s302
      %p311 = scmp.eq.s32.totalorder %s50, 0
      %p312 = por %p310, %p311
      %p313 = scmp.ne.s32.totalorder %s301, %s302
      %p314 = scmp.eq.s32.totalorder %s51, 1
      %p315 = por %p313, %p314
      %p317 = scmp.ne.s32.totalorder %s302, %s316
      %p318 = scmp.eq.s32.totalorder %s51, 0
      %p319 = por %p317, %p318
      %s321 = sadd.s32 %s320, 1
      %p324 = scmp.eq.s32.totalorder %s45, 1
      %p325 = scmp.ne.s32.totalorder %s320, %s322
      %p326 = scmp.eq.s32.totalorder %s45, 0
      %p327 = por %p325, %p326
      %p328 = scmp.ne.s32.totalorder %s320, %s322
      %p329 = scmp.eq.s32.totalorder %s50, 1
      %p330 = por %p328, %p329
      %p331 = scmp.ne.s32.totalorder %s322, %s323
      %p332 = scmp.eq.s32.totalorder %s50, 0
      %p333 = por %p331, %p332
      %p334 = scmp.ne.s32.totalorder %s322, %s323
      %p335 = scmp.eq.s32.totalorder %s51, 1
      %p336 = por %p334, %p335
      %p338 = scmp.ne.s32.totalorder %s323, %s337
      %p339 = scmp.eq.s32.totalorder %s51, 0
      %p340 = por %p338, %p339
      %s342 = sadd.s32 %s341, 1
      %p345 = scmp.eq.s32.totalorder %s45, 1
      %p346 = scmp.ne.s32.totalorder %s341, %s343
      %p347 = scmp.eq.s32.totalorder %s45, 0
      %p348 = por %p346, %p347
      %p349 = scmp.ne.s32.totalorder %s341, %s343
      %p350 = scmp.eq.s32.totalorder %s50, 1
      %p351 = por %p349, %p350
      %p352 = scmp.ne.s32.totalorder %s343, %s344
      %p353 = scmp.eq.s32.totalorder %s50, 0
      %p354 = por %p352, %p353
      %p355 = scmp.ne.s32.totalorder %s343, %s344
      %p356 = scmp.eq.s32.totalorder %s51, 1
      %p357 = por %p355, %p356
      %p359 = scmp.ne.s32.totalorder %s344, %s358
      %p360 = scmp.eq.s32.totalorder %s51, 0
      %p361 = por %p359, %p360
      %s363 = sadd.s32 %s362, 1
      %p366 = scmp.eq.s32.totalorder %s45, 1
      %p367 = scmp.ne.s32.totalorder %s362, %s364
      %p368 = scmp.eq.s32.totalorder %s45, 0
      %p369 = por %p367, %p368
      %p370 = scmp.ne.s32.totalorder %s362, %s364
      %p371 = scmp.eq.s32.totalorder %s50, 1
      %p372 = por %p370, %p371
      %p373 = scmp.ne.s32.totalorder %s364, %s365
      %p374 = scmp.eq.s32.totalorder %s50, 0
      %p375 = por %p373, %p374
      %p376 = scmp.ne.s32.totalorder %s364, %s365
      %p377 = scmp.eq.s32.totalorder %s51, 1
      %p378 = por %p376, %p377
      %p380 = scmp.ne.s32.totalorder %s365, %s379
      %p381 = scmp.eq.s32.totalorder %s51, 0
      %p382 = por %p380, %p381
      %s384 = sadd.s32 %s383, 1
      %p387 = scmp.eq.s32.totalorder %s45, 1
      %p388 = scmp.ne.s32.totalorder %s383, %s385
      %p389 = scmp.eq.s32.totalorder %s45, 0
      %p390 = por %p388, %p389
      %p391 = scmp.ne.s32.totalorder %s383, %s385
      %p392 = scmp.eq.s32.totalorder %s50, 1
      %p393 = por %p391, %p392
      %p394 = scmp.ne.s32.totalorder %s385, %s386
      %p395 = scmp.eq.s32.totalorder %s50, 0
      %p396 = por %p394, %p395
      %p397 = scmp.ne.s32.totalorder %s385, %s386
      %p398 = scmp.eq.s32.totalorder %s51, 1
      %p399 = por %p397, %p398
      %p401 = scmp.ne.s32.totalorder %s386, %s400
      %p402 = scmp.eq.s32.totalorder %s51, 0
      %p403 = por %p401, %p402
      %s404 = ssub.s32 %s45, %s52
      %p405 = scmp.eq.s32.totalorder %s404, 0
      %s407 = sadd.s32 %s406, 1
      %s408 = scalar_select %p405, %s406, %s407
      %p411 = pneg %p405
      %p412 = scmp.eq.s32.totalorder %s45, 1
      %p413 = por %p411, %p412
      %p414 = scmp.ne.s32.totalorder %s406, %s409
      %p415 = scmp.eq.s32.totalorder %s45, 0
      %p416 = por %p414, %p415
      %p417 = scmp.ne.s32.totalorder %s406, %s409
      %p418 = scmp.eq.s32.totalorder %s50, 1
      %p419 = por %p417, %p418
      %p420 = scmp.ne.s32.totalorder %s409, %s410
      %p421 = scmp.eq.s32.totalorder %s50, 0
      %p422 = por %p420, %p421
      %p423 = scmp.ne.s32.totalorder %s409, %s410
      %p424 = scmp.eq.s32.totalorder %s51, 1
      %p425 = por %p423, %p424
      %p427 = scmp.ne.s32.totalorder %s410, %s426
      %p428 = scmp.eq.s32.totalorder %s51, 0
      %p429 = por %p427, %p428
      %s430 = ssub.s32 %s45, %s52
      %p431 = scmp.eq.s32.totalorder %s430, 0
      %s433 = sadd.s32 %s432, 1
      %s434 = scalar_select %p431, %s432, %s433
      %p437 = pneg %p431
      %p438 = scmp.eq.s32.totalorder %s45, 1
      %p439 = por %p437, %p438
      %p440 = scmp.ne.s32.totalorder %s432, %s435
      %p441 = scmp.eq.s32.totalorder %s45, 0
      %p442 = por %p440, %p441
      %p443 = scmp.ne.s32.totalorder %s432, %s435
      %p444 = scmp.eq.s32.totalorder %s50, 1
      %p445 = por %p443, %p444
      %p446 = scmp.ne.s32.totalorder %s435, %s436
      %p447 = scmp.eq.s32.totalorder %s50, 0
      %p448 = por %p446, %p447
      %p449 = scmp.ne.s32.totalorder %s435, %s436
      %p450 = scmp.eq.s32.totalorder %s51, 1
      %p451 = por %p449, %p450
      %p453 = scmp.ne.s32.totalorder %s436, %s452
      %p454 = scmp.eq.s32.totalorder %s51, 0
      %p455 = por %p453, %p454
      %s456 = ssub.s32 %s45, %s52
      %p457 = scmp.eq.s32.totalorder %s456, 0
      %s459 = sadd.s32 %s458, 1
      %s460 = scalar_select %p457, %s458, %s459
      %p463 = pneg %p457
      %p464 = scmp.eq.s32.totalorder %s45, 1
      %p465 = por %p463, %p464
      %p466 = scmp.ne.s32.totalorder %s458, %s461
      %p467 = scmp.eq.s32.totalorder %s45, 0
      %p468 = por %p466, %p467
      %p469 = scmp.ne.s32.totalorder %s458, %s461
      %p470 = scmp.eq.s32.totalorder %s50, 1
      %p471 = por %p469, %p470
      %p472 = scmp.ne.s32.totalorder %s461, %s462
      %p473 = scmp.eq.s32.totalorder %s50, 0
      %p474 = por %p472, %p473
      %p475 = scmp.ne.s32.totalorder %s461, %s462
      %p476 = scmp.eq.s32.totalorder %s51, 1
      %p477 = por %p475, %p476
      %p479 = scmp.ne.s32.totalorder %s462, %s478
      %p480 = scmp.eq.s32.totalorder %s51, 0
      %p481 = por %p479, %p480
      %s482 = ssub.s32 %s45, %s52
      %p483 = scmp.eq.s32.totalorder %s482, 0
      %s485 = sadd.s32 %s484, 1
      %s486 = scalar_select %p483, %s484, %s485
      %p489 = pneg %p483
      %p490 = scmp.eq.s32.totalorder %s45, 1
      %p491 = por %p489, %p490
      %p492 = scmp.ne.s32.totalorder %s484, %s487
      %p493 = scmp.eq.s32.totalorder %s45, 0
      %p494 = por %p492, %p493
      %p495 = scmp.ne.s32.totalorder %s484, %s487
      %p496 = scmp.eq.s32.totalorder %s50, 1
      %p497 = por %p495, %p496
      %p498 = scmp.ne.s32.totalorder %s487, %s488
      %p499 = scmp.eq.s32.totalorder %s50, 0
      %p500 = por %p498, %p499
      %p501 = scmp.ne.s32.totalorder %s487, %s488
      %p502 = scmp.eq.s32.totalorder %s51, 1
      %p503 = por %p501, %p502
      %p505 = scmp.ne.s32.totalorder %s488, %s504
      %p506 = scmp.eq.s32.totalorder %s51, 0
      %p507 = por %p505, %p506
      %p508 = scmp.le.s32.totalorder 1, %s45
      %p509 = scmp.lt.s32.totalorder %s45, 3
      %p510 = pnand %p508, %p509
      %p511 = pneg %p510
      // Predicated region
      $region9: #{tpu_custom_call.1} parent=5 // pred_check
        _
      $region10: #{tpu_custom_call.1} parent=5 // pred_check_branch
        %513 = sbr.rel (%p510) target = $region12
      $region11: #{tpu_custom_call.1} parent=5 // pred_region
        %s514 = ssub.s32 %s45, 1
        // Predicated region
        $region13: #{tpu_custom_call.1} parent=11 // pred_check
          %p515 = pneg %p66
        $region14: #{tpu_custom_call.1} parent=11 // pred_check_branch
          %517 = sbr.rel (%p515) target = $region16
        $region15: #{tpu_custom_call.1} parent=11 // pred_region
          _
        $region16: #{tpu_custom_call.1} parent=11 // pred_fallthru
          _
        // Predicated region
        $region17: #{tpu_custom_call.1} parent=11 // pred_check
          %p518 = pneg %p165
        $region18: #{tpu_custom_call.1} parent=11 // pred_check_branch
          %520 = sbr.rel (%p518) target = $region20
        $region19: #{tpu_custom_call.1} parent=11 // pred_region
          %s522 = ssub.s32 1024, 1024
          %523 = vsyncadd [#allocation10], %s522
          %s524 = sshll.u32 [#allocation9], 4
          %s525 = int_to_ptr.vmem [resolvable:$true] %s524
          %530 = dma.hbm_to_vmem [thread:$0]  %s4, 1024, %s525, [#allocation10], 64, 64, 4
        $region20: #{tpu_custom_call.1} parent=11 // pred_fallthru
          _
        // Predicated region
        $region21: #{tpu_custom_call.1} parent=11 // pred_check
          %p531 = pneg %p186
        $region22: #{tpu_custom_call.1} parent=11 // pred_check_branch
          %533 = sbr.rel (%p531) target = $region24
        $region23: #{tpu_custom_call.1} parent=11 // pred_region
          _
        $region24: #{tpu_custom_call.1} parent=11 // pred_fallthru
          _
        // Predicated region
        $region25: #{tpu_custom_call.1} parent=11 // pred_check
          %p534 = pneg %p207
        $region26: #{tpu_custom_call.1} parent=11 // pred_check_branch
          %536 = sbr.rel (%p534) target = $region28
        $region27: #{tpu_custom_call.1} parent=11 // pred_region
          %s538 = ssub.s32 1024, 1024
          %539 = vsyncadd [#allocation10], %s538
          %s540 = sshll.u32 [#allocation11], 4
          %s541 = int_to_ptr.vmem [resolvable:$true] %s540
          %546 = dma.hbm_to_vmem [thread:$0]  %s6, 1024, %s541, [#allocation10], 64, 64, 4
        $region28: #{tpu_custom_call.1} parent=11 // pred_fallthru
          _
        // Predicated region
        $region29: #{tpu_custom_call.1} parent=11 // pred_check
          %p547 = pneg %p228
        $region30: #{tpu_custom_call.1} parent=11 // pred_check_branch
          %549 = sbr.rel (%p547) target = $region32
        $region31: #{tpu_custom_call.1} parent=11 // pred_region
          _
        $region32: #{tpu_custom_call.1} parent=11 // pred_fallthru
          _
        // Predicated region
        $region33: #{tpu_custom_call.1} parent=11 // pred_check
          %p550 = pneg %p249
        $region34: #{tpu_custom_call.1} parent=11 // pred_check_branch
          %552 = sbr.rel (%p550) target = $region36
        $region35: #{tpu_custom_call.1} parent=11 // pred_region
          %s554 = ssub.s32 1024, 1024
          %555 = vsyncadd [#allocation13], %s554
          %s556 = sshll.u32 [#allocation12], 4
          %s557 = int_to_ptr.vmem [resolvable:$true] %s556
          %562 = dma.hbm_to_vmem [thread:$0]  %s8, 1024, %s557, [#allocation13], 64, 64, 4
        $region36: #{tpu_custom_call.1} parent=11 // pred_fallthru
          _
        // Predicated region
        $region37: #{tpu_custom_call.1} parent=11 // pred_check
          %p563 = pneg %p270
        $region38: #{tpu_custom_call.1} parent=11 // pred_check_branch
          %565 = sbr.rel (%p563) target = $region40
        $region39: #{tpu_custom_call.1} parent=11 // pred_region
          _
        $region40: #{tpu_custom_call.1} parent=11 // pred_fallthru
          _
        // Predicated region
        $region41: #{tpu_custom_call.1} parent=11 // pred_check
          %p566 = pneg %p291
        $region42: #{tpu_custom_call.1} parent=11 // pred_check_branch
          %568 = sbr.rel (%p566) target = $region44
        $region43: #{tpu_custom_call.1} parent=11 // pred_region
          %s570 = ssub.s32 1024, 1024
          %571 = vsyncadd [#allocation13], %s570
          %s572 = sshll.u32 [#allocation14], 4
          %s573 = int_to_ptr.vmem [resolvable:$true] %s572
          %578 = dma.hbm_to_vmem [thread:$0]  %s10, 1024, %s573, [#allocation13], 64, 64, 4
        $region44: #{tpu_custom_call.1} parent=11 // pred_fallthru
          _
        // Predicated region
        $region45: #{tpu_custom_call.1} parent=11 // pred_check
          %p579 = pneg %p312
        $region46: #{tpu_custom_call.1} parent=11 // pred_check_branch
          %581 = sbr.rel (%p579) target = $region48
        $region47: #{tpu_custom_call.1} parent=11 // pred_region
          _
        $region48: #{tpu_custom_call.1} parent=11 // pred_fallthru
          _
        // Predicated region
        $region49: #{tpu_custom_call.1} parent=11 // pred_check
          %p582 = pneg %p333
        $region50: #{tpu_custom_call.1} parent=11 // pred_check_branch
          %584 = sbr.rel (%p582) target = $region52
        $region51: #{tpu_custom_call.1} parent=11 // pred_region
          %s586 = ssub.s32 1024, 1024
          %587 = vsyncadd [#allocation16], %s586
          %s588 = sshll.u32 [#allocation15], 4
          %s589 = int_to_ptr.vmem [resolvable:$true] %s588
          %594 = dma.hbm_to_vmem [thread:$0]  %s12, 1024, %s589, [#allocation16], 64, 64, 4
        $region52: #{tpu_custom_call.1} parent=11 // pred_fallthru
          _
        // Predicated region
        $region53: #{tpu_custom_call.1} parent=11 // pred_check
          %p595 = pneg %p354
        $region54: #{tpu_custom_call.1} parent=11 // pred_check_branch
          %597 = sbr.rel (%p595) target = $region56
        $region55: #{tpu_custom_call.1} parent=11 // pred_region
          _
        $region56: #{tpu_custom_call.1} parent=11 // pred_fallthru
          _
        // Predicated region
        $region57: #{tpu_custom_call.1} parent=11 // pred_check
          %p598 = pneg %p375
        $region58: #{tpu_custom_call.1} parent=11 // pred_check_branch
          %600 = sbr.rel (%p598) target = $region60
        $region59: #{tpu_custom_call.1} parent=11 // pred_region
          %s602 = ssub.s32 1024, 1024
          %603 = vsyncadd [#allocation16], %s602
          %s604 = sshll.u32 [#allocation17], 4
          %s605 = int_to_ptr.vmem [resolvable:$true] %s604
          %610 = dma.hbm_to_vmem [thread:$0]  %s14, 1024, %s605, [#allocation16], 64, 64, 4
        $region60: #{tpu_custom_call.1} parent=11 // pred_fallthru
          _
        // Predicated region
        $region61: #{tpu_custom_call.1} parent=11 // pred_check
          %p611 = pneg %p396
        $region62: #{tpu_custom_call.1} parent=11 // pred_check_branch
          %613 = sbr.rel (%p611) target = $region64
        $region63: #{tpu_custom_call.1} parent=11 // pred_region
          _
        $region64: #{tpu_custom_call.1} parent=11 // pred_fallthru
          _
      $region12: #{tpu_custom_call.1} parent=5 // pred_fallthru
        _
      %p614 = scmp.lt.s32.totalorder %s45, 2
      // Predicated region
      $region65: #{tpu_custom_call.1} parent=5 // pred_check
        %p615 = pneg %p614
      $region66: #{tpu_custom_call.1} parent=5 // pred_check_branch
        %617 = sbr.rel (%p615) target = $region68
      $region67: #{tpu_custom_call.1} parent=5 // pred_region
        // Predicated region
        $region69: #{tpu_custom_call.1} parent=67 // pred_check
          %p618 = pneg %p86
        $region70: #{tpu_custom_call.1} parent=67 // pred_check_branch
          %620 = sbr.rel (%p618) target = $region72
        $region71: #{tpu_custom_call.1} parent=67 // pred_region
          %s621 = sand.u32 %s76, 1
          %s622 = scalar_lea.sflag [#allocation4], %s621
          %s623 = sand.u32 %s76, 1
          %s624 = smul.addr %s623, 8
          %s625 = scalar_lea.vmem [#allocation3], %s624
          %s627 = ssub.s32 128, 128
          %628 = vsyncadd %s622, %s627
          %s629 = smul.addr %s45, 128
          %s630 = scalar_lea.hbm %s1, %s629
          %s632 = sshll.u32 %s625, 4
          %s633 = int_to_ptr.vmem [resolvable:$true] %s632
          %635 = dma.hbm_to_vmem [thread:$0]  %s630, 128, %s633, %s622
        $region72: #{tpu_custom_call.1} parent=67 // pred_fallthru
          _
        // Predicated region
        $region73: #{tpu_custom_call.1} parent=67 // pred_check
          %p636 = pneg %p112
        $region74: #{tpu_custom_call.1} parent=67 // pred_check_branch
          %638 = sbr.rel (%p636) target = $region76
        $region75: #{tpu_custom_call.1} parent=67 // pred_region
          %s639 = sand.u32 %s45, 1
          %s640 = scalar_lea.sflag [#allocation7], %s639
          %s641 = sand.u32 %s102, 1
          %s642 = smul.addr %s641, 4
          %s643 = scalar_lea.vmem [#allocation6], %s642
          %s645 = ssub.s32 64, 64
          %646 = vsyncadd %s640, %s645
          %s647 = smul.addr %s45, 64
          %s648 = scalar_lea.hbm %s2, %s647
          %s650 = sshll.u32 %s643, 4
          %s651 = int_to_ptr.vmem [resolvable:$true] %s650
          %653 = dma.hbm_to_vmem [thread:$0]  %s648, 64, %s651, %s640
        $region76: #{tpu_custom_call.1} parent=67 // pred_fallthru
          _
        // Predicated region
        $region77: #{tpu_custom_call.1} parent=67 // pred_check
          %p654 = pneg %p138
        $region78: #{tpu_custom_call.1} parent=67 // pred_check_branch
          %656 = sbr.rel (%p654) target = $region80
        $region79: #{tpu_custom_call.1} parent=67 // pred_region
          %s657 = sand.u32 %s45, 1
          %s658 = scalar_lea.sflag [#allocation7], %s657
          %s659 = sand.u32 %s128, 1
          %s660 = smul.addr %s659, 4
          %s661 = scalar_lea.vmem [#allocation8], %s660
          %s663 = ssub.s32 64, 64
          %664 = vsyncadd %s658, %s663
          %s665 = smul.addr %s45, 64
          %s666 = scalar_lea.hbm %s3, %s665
          %s668 = sshll.u32 %s661, 4
          %s669 = int_to_ptr.vmem [resolvable:$true] %s668
          %671 = dma.hbm_to_vmem [thread:$0]  %s666, 64, %s669, %s658
        $region80: #{tpu_custom_call.1} parent=67 // pred_fallthru
          _
      $region68: #{tpu_custom_call.1} parent=5 // pred_fallthru
        _
      %p672 = scmp.le.s32.totalorder 1, %s45
      %p673 = scmp.lt.s32.totalorder %s45, 3
      %p674 = pnand %p672, %p673
      %p675 = pneg %p674
      // Predicated region
      $region81: #{tpu_custom_call.1} parent=5 // pred_check
        _
      $region82: #{tpu_custom_call.1} parent=5 // pred_check_branch
        %677 = sbr.rel (%p674) target = $region84
      $region83: #{tpu_custom_call.1} parent=5 // pred_region
        %s678 = ssub.s32 %s45, 1
        %s679 = sand.u32 %s79, 1
        %s680 = scalar_lea.sflag [#allocation4], %s679
        %s681 = sand.u32 %s79, 1
        %s682 = smul.addr %s681, 8
        %s683 = scalar_lea.vmem [#allocation3], %s682
        // Predicated region
        $region85: #{tpu_custom_call.1} parent=83 // pred_check
          %p684 = pneg %p92
        $region86: #{tpu_custom_call.1} parent=83 // pred_check_branch
          %686 = sbr.rel (%p684) target = $region88
        $region87: #{tpu_custom_call.1} parent=83 // pred_region
          %687 = dma.done %s680, 128
        $region88: #{tpu_custom_call.1} parent=83 // pred_fallthru
          _
        %s688 = sand.u32 %s50, 1
        %s689 = scalar_lea.sflag [#allocation7], %s688
        %s690 = sand.u32 %s105, 1
        %s691 = smul.addr %s690, 4
        %s692 = scalar_lea.vmem [#allocation6], %s691
        // Predicated region
        $region89: #{tpu_custom_call.1} parent=83 // pred_check
          %p693 = pneg %p118
        $region90: #{tpu_custom_call.1} parent=83 // pred_check_branch
          %695 = sbr.rel (%p693) target = $region92
        $region91: #{tpu_custom_call.1} parent=83 // pred_region
          %696 = dma.done %s689, 64
        $region92: #{tpu_custom_call.1} parent=83 // pred_fallthru
          _
        %s697 = sand.u32 %s50, 1
        %s698 = scalar_lea.sflag [#allocation7], %s697
        %s699 = sand.u32 %s131, 1
        %s700 = smul.addr %s699, 4
        %s701 = scalar_lea.vmem [#allocation8], %s700
        // Predicated region
        $region93: #{tpu_custom_call.1} parent=83 // pred_check
          %p702 = pneg %p144
        $region94: #{tpu_custom_call.1} parent=83 // pred_check_branch
          %704 = sbr.rel (%p702) target = $region96
        $region95: #{tpu_custom_call.1} parent=83 // pred_region
          %705 = dma.done %s698, 64
        $region96: #{tpu_custom_call.1} parent=83 // pred_fallthru
          _
        // Predicated region
        $region97: #{tpu_custom_call.1} parent=83 // pred_check
          %p706 = pneg %p165
        $region98: #{tpu_custom_call.1} parent=83 // pred_check_branch
          %708 = sbr.rel (%p706) target = $region100
        $region99: #{tpu_custom_call.1} parent=83 // pred_region
          %709 = dma.done [#allocation10], 1024
        $region100: #{tpu_custom_call.1} parent=83 // pred_fallthru
          _
        // Predicated region
        $region101: #{tpu_custom_call.1} parent=83 // pred_check
          %p710 = pneg %p207
        $region102: #{tpu_custom_call.1} parent=83 // pred_check_branch
          %712 = sbr.rel (%p710) target = $region104
        $region103: #{tpu_custom_call.1} parent=83 // pred_region
          %713 = dma.done [#allocation10], 1024
        $region104: #{tpu_custom_call.1} parent=83 // pred_fallthru
          _
        // Predicated region
        $region105: #{tpu_custom_call.1} parent=83 // pred_check
          %p714 = pneg %p249
        $region106: #{tpu_custom_call.1} parent=83 // pred_check_branch
          %716 = sbr.rel (%p714) target = $region108
        $region107: #{tpu_custom_call.1} parent=83 // pred_region
          %717 = dma.done [#allocation13], 1024
        $region108: #{tpu_custom_call.1} parent=83 // pred_fallthru
          _
        // Predicated region
        $region109: #{tpu_custom_call.1} parent=83 // pred_check
          %p718 = pneg %p291
        $region110: #{tpu_custom_call.1} parent=83 // pred_check_branch
          %720 = sbr.rel (%p718) target = $region112
        $region111: #{tpu_custom_call.1} parent=83 // pred_region
          %721 = dma.done [#allocation13], 1024
        $region112: #{tpu_custom_call.1} parent=83 // pred_fallthru
          _
        // Predicated region
        $region113: #{tpu_custom_call.1} parent=83 // pred_check
          %p722 = pneg %p333
        $region114: #{tpu_custom_call.1} parent=83 // pred_check_branch
          %724 = sbr.rel (%p722) target = $region116
        $region115: #{tpu_custom_call.1} parent=83 // pred_region
          %725 = dma.done [#allocation16], 1024
        $region116: #{tpu_custom_call.1} parent=83 // pred_fallthru
          _
        // Predicated region
        $region117: #{tpu_custom_call.1} parent=83 // pred_check
          %p726 = pneg %p375
        $region118: #{tpu_custom_call.1} parent=83 // pred_check_branch
          %728 = sbr.rel (%p726) target = $region120
        $region119: #{tpu_custom_call.1} parent=83 // pred_region
          %729 = dma.done [#allocation16], 1024
        $region120: #{tpu_custom_call.1} parent=83 // pred_fallthru
          _
        %p730 = pneg %p66
        %p731 = pneg %p63
        %s732 = sand.u32 %s79, 1
        %s733 = scalar_lea.sflag [#allocation4], %s732
        %s734 = sand.u32 %s79, 1
        %s735 = smul.addr %s734, 8
        %s736 = scalar_lea.vmem [#allocation3], %s735
        %p737 = pneg %p92
        %p738 = pneg %p89
        %s739 = sand.u32 %s50, 1
        %s740 = scalar_lea.sflag [#allocation7], %s739
        %s741 = sand.u32 %s105, 1
        %s742 = smul.addr %s741, 4
        %s743 = scalar_lea.vmem [#allocation6], %s742
        %p744 = pneg %p118
        %p745 = pneg %p115
        %s746 = sand.u32 %s50, 1
        %s747 = scalar_lea.sflag [#allocation7], %s746
        %s748 = sand.u32 %s131, 1
        %s749 = smul.addr %s748, 4
        %s750 = scalar_lea.vmem [#allocation8], %s749
        %p751 = pneg %p144
        %p752 = pneg %p141
        %p753 = pneg %p165
        %p754 = pneg %p162
        %p755 = pneg %p186
        %p756 = pneg %p183
        %p757 = pneg %p207
        %p758 = pneg %p204
        %p759 = pneg %p228
        %p760 = pneg %p225
        %p761 = pneg %p249
        %p762 = pneg %p246
        %p763 = pneg %p270
        %p764 = pneg %p267
        %p765 = pneg %p291
        %p766 = pneg %p288
        %p767 = pneg %p312
        %p768 = pneg %p309
        %p769 = pneg %p333
        %p770 = pneg %p330
        %p771 = pneg %p354
        %p772 = pneg %p351
        %p773 = pneg %p375
        %p774 = pneg %p372
        %p775 = pneg %p396
        %p776 = pneg %p393
        %p777 = pneg %p422
        %p778 = pneg %p419
        %s779 = sand.u32 %s409, 1
        %s780 = scalar_lea.sflag [#allocation5], %s779
        %s781 = sand.u32 %s409, 1
        %s782 = smul.addr %s781, 8
        %s783 = scalar_lea.vmem [#allocation18], %s782
        %p784 = pneg %p448
        %p785 = pneg %p445
        %s786 = sand.u32 %s50, 1
        %s787 = scalar_lea.sflag [#allocation20], %s786
        %s788 = sand.u32 %s435, 1
        %s789 = smul.addr %s788, 8
        %s790 = scalar_lea.vmem [#allocation19], %s789
        %p791 = pneg %p474
        %p792 = pneg %p471
        %s793 = sand.u32 %s50, 1
        %s794 = scalar_lea.sflag [#allocation20], %s793
        %s795 = sand.u32 %s461, 1
        %s796 = smul.addr %s795, 8
        %s797 = scalar_lea.vmem [#allocation21], %s796
        %p798 = pneg %p500
        %p799 = pneg %p497
        %s800 = sand.u32 %s487, 1
        %s801 = scalar_lea.sflag [#allocation23], %s800
        %s802 = sand.u32 %s487, 1
        %s803 = smul.addr %s802, 8
        %s804 = scalar_lea.vmem [#allocation22], %s803
        %v806 = vld [vmem:[%s683] sm:$0xff]
        %v807 = vld [vmem:[%s692] sm:$0xf]
        %v808 = vld [vmem:[#allocation9] sm:$0xf]
        %v809 = vld [vmem:[#allocation9 + $0x4] sm:$0xf]
        %v810 = vld [vmem:[#allocation9 + $0x8] sm:$0xf]
        %v811 = vld [vmem:[#allocation9 + $0xc] sm:$0xf]
        %v812 = vld [vmem:[#allocation9 + $0x10] sm:$0xf]
        %v813 = vld [vmem:[#allocation9 + $0x14] sm:$0xf]
        %v814 = vld [vmem:[#allocation9 + $0x18] sm:$0xf]
        %v815 = vld [vmem:[#allocation9 + $0x1c] sm:$0xf]
        %v816 = vld [vmem:[#allocation9 + $0x20] sm:$0xf]
        %v817 = vld [vmem:[#allocation9 + $0x24] sm:$0xf]
        %v818 = vld [vmem:[#allocation9 + $0x28] sm:$0xf]
        %v819 = vld [vmem:[#allocation9 + $0x2c] sm:$0xf]
        %v820 = vld [vmem:[#allocation9 + $0x30] sm:$0xf]
        %v821 = vld [vmem:[#allocation9 + $0x34] sm:$0xf]
        %v822 = vld [vmem:[#allocation9 + $0x38] sm:$0xf]
        %v823 = vld [vmem:[#allocation9 + $0x3c] sm:$0xf]
        %v824 = vld [vmem:[%s5] sm:$0x1]
        %v826 = vlaneseq
        %v827 = vshrl.u32 %v826, 7
        %v828 = vsub.s32 0, %v827
        %v829 = vrot.slane %v824, %v828
        %v847 = vunpack.c.l.b16 %v808
        %v848 = vunpack.c.l.b16 %v809
        %v849 = vunpack.c.l.b16 %v810
        %v850 = vunpack.c.l.b16 %v811
        %v851 = vunpack.c.l.b16 %v812
        %v852 = vunpack.c.l.b16 %v813
        %v853 = vunpack.c.l.b16 %v814
        %v854 = vunpack.c.l.b16 %v815
        %v855 = vunpack.c.l.b16 %v816
        %v856 = vunpack.c.l.b16 %v817
        %v857 = vunpack.c.l.b16 %v818
        %v858 = vunpack.c.l.b16 %v819
        %v859 = vunpack.c.l.b16 %v820
        %v860 = vunpack.c.l.b16 %v821
        %v861 = vunpack.c.l.b16 %v822
        %v862 = vunpack.c.l.b16 %v823
        %v863 = vpack.c.b16 %v848, %v847
        %v864 = vpack.c.b16 %v850, %v849
        %v865 = vpack.c.b16 %v852, %v851
        %v866 = vpack.c.b16 %v854, %v853
        %v867 = vpack.c.b16 %v856, %v855
        %v868 = vpack.c.b16 %v858, %v857
        %v869 = vpack.c.b16 %v860, %v859
        %v870 = vpack.c.b16 %v862, %v861
        %879 = vmatprep.subr.bf16.mxu0 0
        %880 = vmatpush1.bf16.msra.mxu0 %v870
        %881 = vmatprep.subr.bf16.mxu0 0
        %882 = vmatpush1.bf16.msra.mxu0 %v869
        %883 = vmatprep.subr.bf16.mxu0 0
        %884 = vmatpush1.bf16.msra.mxu0 %v868
        %885 = vmatprep.subr.bf16.mxu0 0
        %886 = vmatpush1.bf16.msra.mxu0 %v867
        %887 = vmatprep.subr.bf16.mxu0 0
        %888 = vmatpush1.bf16.msra.mxu0 %v866
        %889 = vmatprep.subr.bf16.mxu0 0
        %890 = vmatpush1.bf16.msra.mxu0 %v865
        %891 = vmatprep.subr.bf16.mxu0 0
        %892 = vmatpush1.bf16.msra.mxu0 %v864
        %893 = vmatprep.subr.bf16.mxu0 0
        %894 = vmatpush1.bf16.msra.mxu0 %v863
        %895 = vmatprep.subr.bf16.mxu0 0
        %896 = vmatpush2.bf16.msra.mxu0 0
        %897 = vmatprep.subr.bf16.mxu0 0
        %898 = vmatpush2.bf16.msra.mxu0 0
        %899 = vmatprep.subr.bf16.mxu0 0
        %900 = vmatpush2.bf16.msra.mxu0 0
        %901 = vmatprep.subr.bf16.mxu0 0
        %902 = vmatpush2.bf16.msra.mxu0 0
        %903 = vmatprep.subr.bf16.mxu0 0
        %904 = vmatpush2.bf16.msra.mxu0 0
        %905 = vmatprep.subr.bf16.mxu0 0
        %906 = vmatpush2.bf16.msra.mxu0 0
        %907 = vmatprep.subr.bf16.mxu0 0
        %908 = vmatpush2.bf16.msra.mxu0 0
        %909 = vmatprep.subr.bf16.mxu0 0
        %910 = vmatpush2.bf16.msra.mxu0 0
        %911 = vmatprep.mubr.bf16.mxu0 0
        %912 = vmatmul.mubr.bf16.gmra.mxu0 %v807
        %v913 = vpop.f32.mrf.mxu0
        %v914 = vadd.f32 %v829, %v913
        %v915 = vpop.f32.mrf.mxu0
        %v916 = vpop.f32.mrf.mxu0
        %v917 = vpop.f32.mrf.mxu0
        %918 = vdwg.mxu0
        %v919 = vmax.f32 %v914, 0.0
        %v920 = vpack.c.bf16 %v919, %v919
        %v921 = vld [vmem:[#allocation11] sm:$0xf]
        %v922 = vld [vmem:[#allocation11 + $0x4] sm:$0xf]
        %v923 = vld [vmem:[#allocation11 + $0x8] sm:$0xf]
        %v924 = vld [vmem:[#allocation11 + $0xc] sm:$0xf]
        %v925 = vld [vmem:[#allocation11 + $0x10] sm:$0xf]
        %v926 = vld [vmem:[#allocation11 + $0x14] sm:$0xf]
        %v927 = vld [vmem:[#allocation11 + $0x18] sm:$0xf]
        %v928 = vld [vmem:[#allocation11 + $0x1c] sm:$0xf]
        %v929 = vld [vmem:[#allocation11 + $0x20] sm:$0xf]
        %v930 = vld [vmem:[#allocation11 + $0x24] sm:$0xf]
        %v931 = vld [vmem:[#allocation11 + $0x28] sm:$0xf]
        %v932 = vld [vmem:[#allocation11 + $0x2c] sm:$0xf]
        %v933 = vld [vmem:[#allocation11 + $0x30] sm:$0xf]
        %v934 = vld [vmem:[#allocation11 + $0x34] sm:$0xf]
        %v935 = vld [vmem:[#allocation11 + $0x38] sm:$0xf]
        %v936 = vld [vmem:[#allocation11 + $0x3c] sm:$0xf]
        %v937 = vld [vmem:[%s7] sm:$0x1]
        %v939 = vlaneseq
        %v940 = vshrl.u32 %v939, 7
        %v941 = vsub.s32 0, %v940
        %v942 = vrot.slane %v937, %v941
        %v960 = vunpack.c.l.b16 %v921
        %v961 = vunpack.c.l.b16 %v922
        %v962 = vunpack.c.l.b16 %v923
        %v963 = vunpack.c.l.b16 %v924
        %v964 = vunpack.c.l.b16 %v925
        %v965 = vunpack.c.l.b16 %v926
        %v966 = vunpack.c.l.b16 %v927
        %v967 = vunpack.c.l.b16 %v928
        %v968 = vunpack.c.l.b16 %v929
        %v969 = vunpack.c.l.b16 %v930
        %v970 = vunpack.c.l.b16 %v931
        %v971 = vunpack.c.l.b16 %v932
        %v972 = vunpack.c.l.b16 %v933
        %v973 = vunpack.c.l.b16 %v934
        %v974 = vunpack.c.l.b16 %v935
        %v975 = vunpack.c.l.b16 %v936
        %v976 = vpack.c.b16 %v961, %v960
        %v977 = vpack.c.b16 %v963, %v962
        %v978 = vpack.c.b16 %v965, %v964
        %v979 = vpack.c.b16 %v967, %v966
        %v980 = vpack.c.b16 %v969, %v968
        %v981 = vpack.c.b16 %v971, %v970
        %v982 = vpack.c.b16 %v973, %v972
        %v983 = vpack.c.b16 %v975, %v974
        %992 = vmatprep.subr.bf16.mxu0 0
        %993 = vmatpush1.bf16.msra.mxu0 %v983
        %994 = vmatprep.subr.bf16.mxu0 0
        %995 = vmatpush1.bf16.msra.mxu0 %v982
        %996 = vmatprep.subr.bf16.mxu0 0
        %997 = vmatpush1.bf16.msra.mxu0 %v981
        %998 = vmatprep.subr.bf16.mxu0 0
        %999 = vmatpush1.bf16.msra.mxu0 %v980
        %1000 = vmatprep.subr.bf16.mxu0 0
        %1001 = vmatpush1.bf16.msra.mxu0 %v979
        %1002 = vmatprep.subr.bf16.mxu0 0
        %1003 = vmatpush1.bf16.msra.mxu0 %v978
        %1004 = vmatprep.subr.bf16.mxu0 0
        %1005 = vmatpush1.bf16.msra.mxu0 %v977
        %1006 = vmatprep.subr.bf16.mxu0 0
        %1007 = vmatpush1.bf16.msra.mxu0 %v976
        %1008 = vmatprep.subr.bf16.mxu0 0
        %1009 = vmatpush2.bf16.msra.mxu0 0
        %1010 = vmatprep.subr.bf16.mxu0 0
        %1011 = vmatpush2.bf16.msra.mxu0 0
        %1012 = vmatprep.subr.bf16.mxu0 0
        %1013 = vmatpush2.bf16.msra.mxu0 0
        %1014 = vmatprep.subr.bf16.mxu0 0
        %1015 = vmatpush2.bf16.msra.mxu0 0
        %1016 = vmatprep.subr.bf16.mxu0 0
        %1017 = vmatpush2.bf16.msra.mxu0 0
        %1018 = vmatprep.subr.bf16.mxu0 0
        %1019 = vmatpush2.bf16.msra.mxu0 0
        %1020 = vmatprep.subr.bf16.mxu0 0
        %1021 = vmatpush2.bf16.msra.mxu0 0
        %1022 = vmatprep.subr.bf16.mxu0 0
        %1023 = vmatpush2.bf16.msra.mxu0 0
        %1024 = vmatprep.mubr.bf16.mxu0 0
        %1025 = vmatmul.mubr.bf16.gmra.mxu0 %v920
        %v1026 = vpop.f32.mrf.mxu0
        %v1027 = vadd.f32 %v942, %v1026
        %v1028 = vpop.f32.mrf.mxu0
        %v1029 = vpop.f32.mrf.mxu0
        %v1030 = vpop.f32.mrf.mxu0
        %1031 = vdwg.mxu0
        %v1032 = vld [vmem:[%s701] sm:$0xf]
        %v1033 = vld [vmem:[#allocation12] sm:$0xf]
        %v1034 = vld [vmem:[#allocation12 + $0x4] sm:$0xf]
        %v1035 = vld [vmem:[#allocation12 + $0x8] sm:$0xf]
        %v1036 = vld [vmem:[#allocation12 + $0xc] sm:$0xf]
        %v1037 = vld [vmem:[#allocation12 + $0x10] sm:$0xf]
        %v1038 = vld [vmem:[#allocation12 + $0x14] sm:$0xf]
        %v1039 = vld [vmem:[#allocation12 + $0x18] sm:$0xf]
        %v1040 = vld [vmem:[#allocation12 + $0x1c] sm:$0xf]
        %v1041 = vld [vmem:[#allocation12 + $0x20] sm:$0xf]
        %v1042 = vld [vmem:[#allocation12 + $0x24] sm:$0xf]
        %v1043 = vld [vmem:[#allocation12 + $0x28] sm:$0xf]
        %v1044 = vld [vmem:[#allocation12 + $0x2c] sm:$0xf]
        %v1045 = vld [vmem:[#allocation12 + $0x30] sm:$0xf]
        %v1046 = vld [vmem:[#allocation12 + $0x34] sm:$0xf]
        %v1047 = vld [vmem:[#allocation12 + $0x38] sm:$0xf]
        %v1048 = vld [vmem:[#allocation12 + $0x3c] sm:$0xf]
        %v1049 = vld [vmem:[%s9] sm:$0x1]
        %v1051 = vlaneseq
        %v1052 = vshrl.u32 %v1051, 7
        %v1053 = vsub.s32 0, %v1052
        %v1054 = vrot.slane %v1049, %v1053
        %v1072 = vunpack.c.l.b16 %v1033
        %v1073 = vunpack.c.l.b16 %v1034
        %v1074 = vunpack.c.l.b16 %v1035
        %v1075 = vunpack.c.l.b16 %v1036
        %v1076 = vunpack.c.l.b16 %v1037
        %v1077 = vunpack.c.l.b16 %v1038
        %v1078 = vunpack.c.l.b16 %v1039
        %v1079 = vunpack.c.l.b16 %v1040
        %v1080 = vunpack.c.l.b16 %v1041
        %v1081 = vunpack.c.l.b16 %v1042
        %v1082 = vunpack.c.l.b16 %v1043
        %v1083 = vunpack.c.l.b16 %v1044
        %v1084 = vunpack.c.l.b16 %v1045
        %v1085 = vunpack.c.l.b16 %v1046
        %v1086 = vunpack.c.l.b16 %v1047
        %v1087 = vunpack.c.l.b16 %v1048
        %v1088 = vpack.c.b16 %v1073, %v1072
        %v1089 = vpack.c.b16 %v1075, %v1074
        %v1090 = vpack.c.b16 %v1077, %v1076
        %v1091 = vpack.c.b16 %v1079, %v1078
        %v1092 = vpack.c.b16 %v1081, %v1080
        %v1093 = vpack.c.b16 %v1083, %v1082
        %v1094 = vpack.c.b16 %v1085, %v1084
        %v1095 = vpack.c.b16 %v1087, %v1086
        %1104 = vmatprep.subr.bf16.mxu0 0
        %1105 = vmatpush1.bf16.msra.mxu0 %v1095
        %1106 = vmatprep.subr.bf16.mxu0 0
        %1107 = vmatpush1.bf16.msra.mxu0 %v1094
        %1108 = vmatprep.subr.bf16.mxu0 0
        %1109 = vmatpush1.bf16.msra.mxu0 %v1093
        %1110 = vmatprep.subr.bf16.mxu0 0
        %1111 = vmatpush1.bf16.msra.mxu0 %v1092
        %1112 = vmatprep.subr.bf16.mxu0 0
        %1113 = vmatpush1.bf16.msra.mxu0 %v1091
        %1114 = vmatprep.subr.bf16.mxu0 0
        %1115 = vmatpush1.bf16.msra.mxu0 %v1090
        %1116 = vmatprep.subr.bf16.mxu0 0
        %1117 = vmatpush1.bf16.msra.mxu0 %v1089
        %1118 = vmatprep.subr.bf16.mxu0 0
        %1119 = vmatpush1.bf16.msra.mxu0 %v1088
        %1120 = vmatprep.subr.bf16.mxu0 0
        %1121 = vmatpush2.bf16.msra.mxu0 0
        %1122 = vmatprep.subr.bf16.mxu0 0
        %1123 = vmatpush2.bf16.msra.mxu0 0
        %1124 = vmatprep.subr.bf16.mxu0 0
        %1125 = vmatpush2.bf16.msra.mxu0 0
        %1126 = vmatprep.subr.bf16.mxu0 0
        %1127 = vmatpush2.bf16.msra.mxu0 0
        %1128 = vmatprep.subr.bf16.mxu0 0
        %1129 = vmatpush2.bf16.msra.mxu0 0
        %1130 = vmatprep.subr.bf16.mxu0 0
        %1131 = vmatpush2.bf16.msra.mxu0 0
        %1132 = vmatprep.subr.bf16.mxu0 0
        %1133 = vmatpush2.bf16.msra.mxu0 0
        %1134 = vmatprep.subr.bf16.mxu0 0
        %1135 = vmatpush2.bf16.msra.mxu0 0
        %1136 = vmatprep.mubr.bf16.mxu0 0
        %1137 = vmatmul.mubr.bf16.gmra.mxu0 %v1032
        %v1138 = vpop.f32.mrf.mxu0
        %v1139 = vadd.f32 %v1054, %v1138
        %v1140 = vpop.f32.mrf.mxu0
        %v1141 = vpop.f32.mrf.mxu0
        %v1142 = vpop.f32.mrf.mxu0
        %1143 = vdwg.mxu0
        %v1144 = vmax.f32 %v1139, 0.0
        %v1145 = vpack.c.bf16 %v1144, %v1144
        %v1146 = vld [vmem:[#allocation14] sm:$0xf]
        %v1147 = vld [vmem:[#allocation14 + $0x4] sm:$0xf]
        %v1148 = vld [vmem:[#allocation14 + $0x8] sm:$0xf]
        %v1149 = vld [vmem:[#allocation14 + $0xc] sm:$0xf]
        %v1150 = vld [vmem:[#allocation14 + $0x10] sm:$0xf]
        %v1151 = vld [vmem:[#allocation14 + $0x14] sm:$0xf]
        %v1152 = vld [vmem:[#allocation14 + $0x18] sm:$0xf]
        %v1153 = vld [vmem:[#allocation14 + $0x1c] sm:$0xf]
        %v1154 = vld [vmem:[#allocation14 + $0x20] sm:$0xf]
        %v1155 = vld [vmem:[#allocation14 + $0x24] sm:$0xf]
        %v1156 = vld [vmem:[#allocation14 + $0x28] sm:$0xf]
        %v1157 = vld [vmem:[#allocation14 + $0x2c] sm:$0xf]
        %v1158 = vld [vmem:[#allocation14 + $0x30] sm:$0xf]
        %v1159 = vld [vmem:[#allocation14 + $0x34] sm:$0xf]
        %v1160 = vld [vmem:[#allocation14 + $0x38] sm:$0xf]
        %v1161 = vld [vmem:[#allocation14 + $0x3c] sm:$0xf]
        %v1162 = vld [vmem:[%s11] sm:$0x1]
        %v1164 = vlaneseq
        %v1165 = vshrl.u32 %v1164, 7
        %v1166 = vsub.s32 0, %v1165
        %v1167 = vrot.slane %v1162, %v1166
        %v1185 = vunpack.c.l.b16 %v1146
        %v1186 = vunpack.c.l.b16 %v1147
        %v1187 = vunpack.c.l.b16 %v1148
        %v1188 = vunpack.c.l.b16 %v1149
        %v1189 = vunpack.c.l.b16 %v1150
        %v1190 = vunpack.c.l.b16 %v1151
        %v1191 = vunpack.c.l.b16 %v1152
        %v1192 = vunpack.c.l.b16 %v1153
        %v1193 = vunpack.c.l.b16 %v1154
        %v1194 = vunpack.c.l.b16 %v1155
        %v1195 = vunpack.c.l.b16 %v1156
        %v1196 = vunpack.c.l.b16 %v1157
        %v1197 = vunpack.c.l.b16 %v1158
        %v1198 = vunpack.c.l.b16 %v1159
        %v1199 = vunpack.c.l.b16 %v1160
        %v1200 = vunpack.c.l.b16 %v1161
        %v1201 = vpack.c.b16 %v1186, %v1185
        %v1202 = vpack.c.b16 %v1188, %v1187
        %v1203 = vpack.c.b16 %v1190, %v1189
        %v1204 = vpack.c.b16 %v1192, %v1191
        %v1205 = vpack.c.b16 %v1194, %v1193
        %v1206 = vpack.c.b16 %v1196, %v1195
        %v1207 = vpack.c.b16 %v1198, %v1197
        %v1208 = vpack.c.b16 %v1200, %v1199
        %1217 = vmatprep.subr.bf16.mxu0 0
        %1218 = vmatpush1.bf16.msra.mxu0 %v1208
        %1219 = vmatprep.subr.bf16.mxu0 0
        %1220 = vmatpush1.bf16.msra.mxu0 %v1207
        %1221 = vmatprep.subr.bf16.mxu0 0
        %1222 = vmatpush1.bf16.msra.mxu0 %v1206
        %1223 = vmatprep.subr.bf16.mxu0 0
        %1224 = vmatpush1.bf16.msra.mxu0 %v1205
        %1225 = vmatprep.subr.bf16.mxu0 0
        %1226 = vmatpush1.bf16.msra.mxu0 %v1204
        %1227 = vmatprep.subr.bf16.mxu0 0
        %1228 = vmatpush1.bf16.msra.mxu0 %v1203
        %1229 = vmatprep.subr.bf16.mxu0 0
        %1230 = vmatpush1.bf16.msra.mxu0 %v1202
        %1231 = vmatprep.subr.bf16.mxu0 0
        %1232 = vmatpush1.bf16.msra.mxu0 %v1201
        %1233 = vmatprep.subr.bf16.mxu0 0
        %1234 = vmatpush2.bf16.msra.mxu0 0
        %1235 = vmatprep.subr.bf16.mxu0 0
        %1236 = vmatpush2.bf16.msra.mxu0 0
        %1237 = vmatprep.subr.bf16.mxu0 0
        %1238 = vmatpush2.bf16.msra.mxu0 0
        %1239 = vmatprep.subr.bf16.mxu0 0
        %1240 = vmatpush2.bf16.msra.mxu0 0
        %1241 = vmatprep.subr.bf16.mxu0 0
        %1242 = vmatpush2.bf16.msra.mxu0 0
        %1243 = vmatprep.subr.bf16.mxu0 0
        %1244 = vmatpush2.bf16.msra.mxu0 0
        %1245 = vmatprep.subr.bf16.mxu0 0
        %1246 = vmatpush2.bf16.msra.mxu0 0
        %1247 = vmatprep.subr.bf16.mxu0 0
        %1248 = vmatpush2.bf16.msra.mxu0 0
        %1249 = vmatprep.mubr.bf16.mxu0 0
        %1250 = vmatmul.mubr.bf16.gmra.mxu0 %v1145
        %v1251 = vpop.f32.mrf.mxu0
        %v1252 = vadd.f32 %v1167, %v1251
        %v1253 = vpop.f32.mrf.mxu0
        %v1254 = vpop.f32.mrf.mxu0
        %v1255 = vpop.f32.mrf.mxu0
        %1256 = vdwg.mxu0
        %v1257 = vxor.u32 %v806, 2147483648
        %v1258 = vmul.f32 %v1257, 1.442695
        %v1259 = vpow.pop %v1258
        %v1260 = vadd.f32 %v1259, 1.0
        %v1261 = vrcp.pop %v1260
        %v1262 = vmul.f32 1.0, %v1261
        %v1263 = vxor.u32 %v1027, 2147483648
        %v1264 = vmul.f32 %v1263, 1.442695
        %v1265 = vpow.pop %v1264
        %v1266 = vadd.f32 %v1265, 1.0
        %v1267 = vrcp.pop %v1266
        %v1268 = vmul.f32 1.0, %v1267
        %v1269 = vxor.u32 %v1252, 2147483648
        %v1270 = vmul.f32 %v1269, 1.442695
        %v1271 = vpow.pop %v1270
        %v1272 = vadd.f32 %v1271, 1.0
        %v1273 = vrcp.pop %v1272
        %v1274 = vmul.f32 1.0, %v1273
        %v1275 = vmul.f32 %v1262, %v1268
        %v1276 = vmul.f32 %v1275, %v1274
        %v1277 = vadd.f32 %v1276, 1e-12
        %v1278 = vadd.f32 %v1276, 1.0
        %v1279 = vrcp.pop %v1278
        %v1280 = vmul.f32 %v1277, %v1279
        %v1281 = vlog2.pop %v1280
        %v1282 = vmul.f32 %v1281, 0.6931472
        %s1283 = sld [smem:[#allocation2]]
        %s1284 = sxor.u32 %s1283, 2147483648
        %v1285 = vstv %s1284
        %v1286 = vmul.f32 %v1285, 1.442695
        %v1287 = vpow.pop %v1286
        %s1288 = vtos %v1287
        %s1289 = sadd.f32 %s1288, 1.0
        %v1290 = vstv %s1289
        %v1291 = vrcp.pop %v1290
        %s1292 = vtos %v1291
        %s1293 = smul.f32 %s1292, %s1292
        %v1294 = vstv %s1293
        %v1295 = vmul.f32 %v1294, %v1268
        %v1296 = vadd.f32 %v1295, 1e-12
        %v1297 = vadd.f32 %v1295, 1.0
        %v1298 = vrcp.pop %v1297
        %v1299 = vmul.f32 %v1296, %v1298
        %v1300 = vlog2.pop %v1299
        %v1301 = vmul.f32 %v1300, 0.6931472
        %v1302 = vpack.c.bf16 %v1027, %v1027
        %v1303 = vld [vmem:[#allocation15] sm:$0xf]
        %v1304 = vld [vmem:[#allocation15 + $0x4] sm:$0xf]
        %v1305 = vld [vmem:[#allocation15 + $0x8] sm:$0xf]
        %v1306 = vld [vmem:[#allocation15 + $0xc] sm:$0xf]
        %v1307 = vld [vmem:[#allocation15 + $0x10] sm:$0xf]
        %v1308 = vld [vmem:[#allocation15 + $0x14] sm:$0xf]
        %v1309 = vld [vmem:[#allocation15 + $0x18] sm:$0xf]
        %v1310 = vld [vmem:[#allocation15 + $0x1c] sm:$0xf]
        %v1311 = vld [vmem:[#allocation15 + $0x20] sm:$0xf]
        %v1312 = vld [vmem:[#allocation15 + $0x24] sm:$0xf]
        %v1313 = vld [vmem:[#allocation15 + $0x28] sm:$0xf]
        %v1314 = vld [vmem:[#allocation15 + $0x2c] sm:$0xf]
        %v1315 = vld [vmem:[#allocation15 + $0x30] sm:$0xf]
        %v1316 = vld [vmem:[#allocation15 + $0x34] sm:$0xf]
        %v1317 = vld [vmem:[#allocation15 + $0x38] sm:$0xf]
        %v1318 = vld [vmem:[#allocation15 + $0x3c] sm:$0xf]
        %v1319 = vld [vmem:[%s13] sm:$0x1]
        %v1321 = vlaneseq
        %v1322 = vshrl.u32 %v1321, 7
        %v1323 = vsub.s32 0, %v1322
        %v1324 = vrot.slane %v1319, %v1323
        %v1342 = vunpack.c.l.b16 %v1303
        %v1343 = vunpack.c.l.b16 %v1304
        %v1344 = vunpack.c.l.b16 %v1305
        %v1345 = vunpack.c.l.b16 %v1306
        %v1346 = vunpack.c.l.b16 %v1307
        %v1347 = vunpack.c.l.b16 %v1308
        %v1348 = vunpack.c.l.b16 %v1309
        %v1349 = vunpack.c.l.b16 %v1310
        %v1350 = vunpack.c.l.b16 %v1311
        %v1351 = vunpack.c.l.b16 %v1312
        %v1352 = vunpack.c.l.b16 %v1313
        %v1353 = vunpack.c.l.b16 %v1314
        %v1354 = vunpack.c.l.b16 %v1315
        %v1355 = vunpack.c.l.b16 %v1316
        %v1356 = vunpack.c.l.b16 %v1317
        %v1357 = vunpack.c.l.b16 %v1318
        %v1358 = vpack.c.b16 %v1343, %v1342
        %v1359 = vpack.c.b16 %v1345, %v1344
        %v1360 = vpack.c.b16 %v1347, %v1346
        %v1361 = vpack.c.b16 %v1349, %v1348
        %v1362 = vpack.c.b16 %v1351, %v1350
        %v1363 = vpack.c.b16 %v1353, %v1352
        %v1364 = vpack.c.b16 %v1355, %v1354
        %v1365 = vpack.c.b16 %v1357, %v1356
        %1374 = vmatprep.subr.bf16.mxu0 0
        %1375 = vmatpush1.bf16.msra.mxu0 %v1365
        %1376 = vmatprep.subr.bf16.mxu0 0
        %1377 = vmatpush1.bf16.msra.mxu0 %v1364
        %1378 = vmatprep.subr.bf16.mxu0 0
        %1379 = vmatpush1.bf16.msra.mxu0 %v1363
        %1380 = vmatprep.subr.bf16.mxu0 0
        %1381 = vmatpush1.bf16.msra.mxu0 %v1362
        %1382 = vmatprep.subr.bf16.mxu0 0
        %1383 = vmatpush1.bf16.msra.mxu0 %v1361
        %1384 = vmatprep.subr.bf16.mxu0 0
        %1385 = vmatpush1.bf16.msra.mxu0 %v1360
        %1386 = vmatprep.subr.bf16.mxu0 0
        %1387 = vmatpush1.bf16.msra.mxu0 %v1359
        %1388 = vmatprep.subr.bf16.mxu0 0
        %1389 = vmatpush1.bf16.msra.mxu0 %v1358
        %1390 = vmatprep.subr.bf16.mxu0 0
        %1391 = vmatpush2.bf16.msra.mxu0 0
        %1392 = vmatprep.subr.bf16.mxu0 0
        %1393 = vmatpush2.bf16.msra.mxu0 0
        %1394 = vmatprep.subr.bf16.mxu0 0
        %1395 = vmatpush2.bf16.msra.mxu0 0
        %1396 = vmatprep.subr.bf16.mxu0 0
        %1397 = vmatpush2.bf16.msra.mxu0 0
        %1398 = vmatprep.subr.bf16.mxu0 0
        %1399 = vmatpush2.bf16.msra.mxu0 0
        %1400 = vmatprep.subr.bf16.mxu0 0
        %1401 = vmatpush2.bf16.msra.mxu0 0
        %1402 = vmatprep.subr.bf16.mxu0 0
        %1403 = vmatpush2.bf16.msra.mxu0 0
        %1404 = vmatprep.subr.bf16.mxu0 0
        %1405 = vmatpush2.bf16.msra.mxu0 0
        %1406 = vmatprep.mubr.bf16.mxu0 0
        %1407 = vmatmul.mubr.bf16.gmra.mxu0 %v1302
        %v1408 = vpop.f32.mrf.mxu0
        %v1409 = vadd.f32 %v1324, %v1408
        %v1410 = vpop.f32.mrf.mxu0
        %v1411 = vpop.f32.mrf.mxu0
        %v1412 = vpop.f32.mrf.mxu0
        %1413 = vdwg.mxu0
        %v1414 = vpack.c.bf16 %v1252, %v1252
        %v1415 = vld [vmem:[#allocation17] sm:$0xf]
        %v1416 = vld [vmem:[#allocation17 + $0x4] sm:$0xf]
        %v1417 = vld [vmem:[#allocation17 + $0x8] sm:$0xf]
        %v1418 = vld [vmem:[#allocation17 + $0xc] sm:$0xf]
        %v1419 = vld [vmem:[#allocation17 + $0x10] sm:$0xf]
        %v1420 = vld [vmem:[#allocation17 + $0x14] sm:$0xf]
        %v1421 = vld [vmem:[#allocation17 + $0x18] sm:$0xf]
        %v1422 = vld [vmem:[#allocation17 + $0x1c] sm:$0xf]
        %v1423 = vld [vmem:[#allocation17 + $0x20] sm:$0xf]
        %v1424 = vld [vmem:[#allocation17 + $0x24] sm:$0xf]
        %v1425 = vld [vmem:[#allocation17 + $0x28] sm:$0xf]
        %v1426 = vld [vmem:[#allocation17 + $0x2c] sm:$0xf]
        %v1427 = vld [vmem:[#allocation17 + $0x30] sm:$0xf]
        %v1428 = vld [vmem:[#allocation17 + $0x34] sm:$0xf]
        %v1429 = vld [vmem:[#allocation17 + $0x38] sm:$0xf]
        %v1430 = vld [vmem:[#allocation17 + $0x3c] sm:$0xf]
        %v1431 = vld [vmem:[%s15] sm:$0x1]
        %v1433 = vlaneseq
        %v1434 = vshrl.u32 %v1433, 7
        %v1435 = vsub.s32 0, %v1434
        %v1436 = vrot.slane %v1431, %v1435
        %v1454 = vunpack.c.l.b16 %v1415
        %v1455 = vunpack.c.l.b16 %v1416
        %v1456 = vunpack.c.l.b16 %v1417
        %v1457 = vunpack.c.l.b16 %v1418
        %v1458 = vunpack.c.l.b16 %v1419
        %v1459 = vunpack.c.l.b16 %v1420
        %v1460 = vunpack.c.l.b16 %v1421
        %v1461 = vunpack.c.l.b16 %v1422
        %v1462 = vunpack.c.l.b16 %v1423
        %v1463 = vunpack.c.l.b16 %v1424
        %v1464 = vunpack.c.l.b16 %v1425
        %v1465 = vunpack.c.l.b16 %v1426
        %v1466 = vunpack.c.l.b16 %v1427
        %v1467 = vunpack.c.l.b16 %v1428
        %v1468 = vunpack.c.l.b16 %v1429
        %v1469 = vunpack.c.l.b16 %v1430
        %v1470 = vpack.c.b16 %v1455, %v1454
        %v1471 = vpack.c.b16 %v1457, %v1456
        %v1472 = vpack.c.b16 %v1459, %v1458
        %v1473 = vpack.c.b16 %v1461, %v1460
        %v1474 = vpack.c.b16 %v1463, %v1462
        %v1475 = vpack.c.b16 %v1465, %v1464
        %v1476 = vpack.c.b16 %v1467, %v1466
        %v1477 = vpack.c.b16 %v1469, %v1468
        %1486 = vmatprep.subr.bf16.mxu0 0
        %1487 = vmatpush1.bf16.msra.mxu0 %v1477
        %1488 = vmatprep.subr.bf16.mxu0 0
        %1489 = vmatpush1.bf16.msra.mxu0 %v1476
        %1490 = vmatprep.subr.bf16.mxu0 0
        %1491 = vmatpush1.bf16.msra.mxu0 %v1475
        %1492 = vmatprep.subr.bf16.mxu0 0
        %1493 = vmatpush1.bf16.msra.mxu0 %v1474
        %1494 = vmatprep.subr.bf16.mxu0 0
        %1495 = vmatpush1.bf16.msra.mxu0 %v1473
        %1496 = vmatprep.subr.bf16.mxu0 0
        %1497 = vmatpush1.bf16.msra.mxu0 %v1472
        %1498 = vmatprep.subr.bf16.mxu0 0
        %1499 = vmatpush1.bf16.msra.mxu0 %v1471
        %1500 = vmatprep.subr.bf16.mxu0 0
        %1501 = vmatpush1.bf16.msra.mxu0 %v1470
        %1502 = vmatprep.subr.bf16.mxu0 0
        %1503 = vmatpush2.bf16.msra.mxu0 0
        %1504 = vmatprep.subr.bf16.mxu0 0
        %1505 = vmatpush2.bf16.msra.mxu0 0
        %1506 = vmatprep.subr.bf16.mxu0 0
        %1507 = vmatpush2.bf16.msra.mxu0 0
        %1508 = vmatprep.subr.bf16.mxu0 0
        %1509 = vmatpush2.bf16.msra.mxu0 0
        %1510 = vmatprep.subr.bf16.mxu0 0
        %1511 = vmatpush2.bf16.msra.mxu0 0
        %1512 = vmatprep.subr.bf16.mxu0 0
        %1513 = vmatpush2.bf16.msra.mxu0 0
        %1514 = vmatprep.subr.bf16.mxu0 0
        %1515 = vmatpush2.bf16.msra.mxu0 0
        %1516 = vmatprep.subr.bf16.mxu0 0
        %1517 = vmatpush2.bf16.msra.mxu0 0
        %1518 = vmatprep.mubr.bf16.mxu0 0
        %1519 = vmatmul.mubr.bf16.gmra.mxu0 %v1414
        %v1520 = vpop.f32.mrf.mxu0
        %v1521 = vadd.f32 %v1436, %v1520
        %v1522 = vpop.f32.mrf.mxu0
        %v1523 = vpop.f32.mrf.mxu0
        %v1524 = vpop.f32.mrf.mxu0
        %1525 = vdwg.mxu0
        %1526 = vst [vmem:[%s783] sm:$0xff] %v1282
        %v1527 = vsub.f32 %v1282, %v1301
        %1528 = vst [vmem:[%s790] sm:$0xff] %v1527
        %1529 = vst [vmem:[%s797] sm:$0xff] %v1409
        %1530 = vst [vmem:[%s804] sm:$0xff] %v1521
        %s1531 = sand.u32 %s409, 1
        %s1532 = scalar_lea.sflag [#allocation5], %s1531
        %s1533 = sand.u32 %s409, 1
        %s1534 = smul.addr %s1533, 8
        %s1535 = scalar_lea.vmem [#allocation18], %s1534
        %s1536 = sand.u32 %s50, 1
        %s1537 = scalar_lea.sflag [#allocation20], %s1536
        %s1538 = sand.u32 %s435, 1
        %s1539 = smul.addr %s1538, 8
        %s1540 = scalar_lea.vmem [#allocation19], %s1539
        %s1541 = sand.u32 %s50, 1
        %s1542 = scalar_lea.sflag [#allocation20], %s1541
        %s1543 = sand.u32 %s461, 1
        %s1544 = smul.addr %s1543, 8
        %s1545 = scalar_lea.vmem [#allocation21], %s1544
        %s1546 = sand.u32 %s487, 1
        %s1547 = scalar_lea.sflag [#allocation23], %s1546
        %s1548 = sand.u32 %s487, 1
        %s1549 = smul.addr %s1548, 8
        %s1550 = scalar_lea.vmem [#allocation22], %s1549
        // Predicated region
        $region121: #{tpu_custom_call.1} parent=83 // pred_check
          %p1551 = pneg %p419
        $region122: #{tpu_custom_call.1} parent=83 // pred_check_branch
          %1553 = sbr.rel (%p1551) target = $region124
        $region123: #{tpu_custom_call.1} parent=83 // pred_region
          %s1555 = ssub.s32 128, 128
          %1556 = vsyncadd %s1532, %s1555
          %s1557 = smul.addr %s50, 128
          %s1558 = scalar_lea.hbm %s16, %s1557
          %s1560 = sshll.u32 %s1535, 4
          %s1561 = int_to_ptr.vmem [resolvable:$true] %s1560
          %1563 = dma.vmem_to_hbm [thread:$0]  %s1561, 128, %s1558, %s1532
        $region124: #{tpu_custom_call.1} parent=83 // pred_fallthru
          _
        // Predicated region
        $region125: #{tpu_custom_call.1} parent=83 // pred_check
          %p1564 = pneg %p445
        $region126: #{tpu_custom_call.1} parent=83 // pred_check_branch
          %1566 = sbr.rel (%p1564) target = $region128
        $region127: #{tpu_custom_call.1} parent=83 // pred_region
          %s1568 = ssub.s32 128, 128
          %1569 = vsyncadd %s1537, %s1568
          %s1570 = smul.addr %s50, 128
          %s1571 = scalar_lea.hbm %s17, %s1570
          %s1573 = sshll.u32 %s1540, 4
          %s1574 = int_to_ptr.vmem [resolvable:$true] %s1573
          %1576 = dma.vmem_to_hbm [thread:$0]  %s1574, 128, %s1571, %s1537
        $region128: #{tpu_custom_call.1} parent=83 // pred_fallthru
          _
        // Predicated region
        $region129: #{tpu_custom_call.1} parent=83 // pred_check
          %p1577 = pneg %p471
        $region130: #{tpu_custom_call.1} parent=83 // pred_check_branch
          %1579 = sbr.rel (%p1577) target = $region132
        $region131: #{tpu_custom_call.1} parent=83 // pred_region
          %s1581 = ssub.s32 128, 128
          %1582 = vsyncadd %s1542, %s1581
          %s1583 = smul.addr %s50, 128
          %s1584 = scalar_lea.hbm %s18, %s1583
          %s1586 = sshll.u32 %s1545, 4
          %s1587 = int_to_ptr.vmem [resolvable:$true] %s1586
          %1589 = dma.vmem_to_hbm [thread:$0]  %s1587, 128, %s1584, %s1542
        $region132: #{tpu_custom_call.1} parent=83 // pred_fallthru
          _
        // Predicated region
        $region133: #{tpu_custom_call.1} parent=83 // pred_check
          %p1590 = pneg %p497
        $region134: #{tpu_custom_call.1} parent=83 // pred_check_branch
          %1592 = sbr.rel (%p1590) target = $region136
        $region135: #{tpu_custom_call.1} parent=83 // pred_region
          %s1594 = ssub.s32 128, 128
          %1595 = vsyncadd %s1547, %s1594
          %s1596 = smul.addr %s50, 128
          %s1597 = scalar_lea.hbm %s19, %s1596
          %s1599 = sshll.u32 %s1550, 4
          %s1600 = int_to_ptr.vmem [resolvable:$true] %s1599
          %1602 = dma.vmem_to_hbm [thread:$0]  %s1600, 128, %s1597, %s1547
        $region136: #{tpu_custom_call.1} parent=83 // pred_fallthru
          _
      $region84: #{tpu_custom_call.1} parent=5 // pred_fallthru
        _
      %p1603 = scmp.le.s32.totalorder 2, %s45
      // Predicated region
      $region137: #{tpu_custom_call.1} parent=5 // pred_check
        %p1604 = pneg %p1603
      $region138: #{tpu_custom_call.1} parent=5 // pred_check_branch
        %1606 = sbr.rel (%p1604) target = $region140
      $region139: #{tpu_custom_call.1} parent=5 // pred_region
        %s1607 = ssub.s32 %s45, 2
        // Predicated region
        $region141: #{tpu_custom_call.1} parent=139 // pred_check
          %p1608 = pneg %p425
        $region142: #{tpu_custom_call.1} parent=139 // pred_check_branch
          %1610 = sbr.rel (%p1608) target = $region144
        $region143: #{tpu_custom_call.1} parent=139 // pred_region
          %s1611 = sand.u32 %s410, 1
          %s1612 = scalar_lea.sflag [#allocation5], %s1611
          %s1613 = sand.u32 %s410, 1
          %s1614 = smul.addr %s1613, 8
          %s1615 = scalar_lea.vmem [#allocation18], %s1614
          %1616 = dma.done %s1612, 128
        $region144: #{tpu_custom_call.1} parent=139 // pred_fallthru
          _
        // Predicated region
        $region145: #{tpu_custom_call.1} parent=139 // pred_check
          %p1617 = pneg %p451
        $region146: #{tpu_custom_call.1} parent=139 // pred_check_branch
          %1619 = sbr.rel (%p1617) target = $region148
        $region147: #{tpu_custom_call.1} parent=139 // pred_region
          %s1620 = sand.u32 %s51, 1
          %s1621 = scalar_lea.sflag [#allocation20], %s1620
          %s1622 = sand.u32 %s436, 1
          %s1623 = smul.addr %s1622, 8
          %s1624 = scalar_lea.vmem [#allocation19], %s1623
          %1625 = dma.done %s1621, 128
        $region148: #{tpu_custom_call.1} parent=139 // pred_fallthru
          _
        // Predicated region
        $region149: #{tpu_custom_call.1} parent=139 // pred_check
          %p1626 = pneg %p477
        $region150: #{tpu_custom_call.1} parent=139 // pred_check_branch
          %1628 = sbr.rel (%p1626) target = $region152
        $region151: #{tpu_custom_call.1} parent=139 // pred_region
          %s1629 = sand.u32 %s51, 1
          %s1630 = scalar_lea.sflag [#allocation20], %s1629
          %s1631 = sand.u32 %s462, 1
          %s1632 = smul.addr %s1631, 8
          %s1633 = scalar_lea.vmem [#allocation21], %s1632
          %1634 = dma.done %s1630, 128
        $region152: #{tpu_custom_call.1} parent=139 // pred_fallthru
          _
        // Predicated region
        $region153: #{tpu_custom_call.1} parent=139 // pred_check
          %p1635 = pneg %p503
        $region154: #{tpu_custom_call.1} parent=139 // pred_check_branch
          %1637 = sbr.rel (%p1635) target = $region156
        $region155: #{tpu_custom_call.1} parent=139 // pred_region
          %s1638 = sand.u32 %s488, 1
          %s1639 = scalar_lea.sflag [#allocation23], %s1638
          %s1640 = sand.u32 %s488, 1
          %s1641 = smul.addr %s1640, 8
          %s1642 = scalar_lea.vmem [#allocation22], %s1641
          %1643 = dma.done %s1639, 128
        $region156: #{tpu_custom_call.1} parent=139 // pred_fallthru
          _
      $region140: #{tpu_custom_call.1} parent=5 // pred_fallthru
        _
    $region6: #{tpu_custom_call.1} parent=1 // loop_footer
      %s49 = sadd.s32 1, %s45
    $region7: #{tpu_custom_call.1} parent=1 // loop_footer_branch
      %44 = sbr.rel target = $region3
    $region8: #{tpu_custom_call.1} parent=1 // loop_exit
      _
    %1644 = vsyncpa [#allocation4], 1
    %s1645 = scalar_lea.sflag [#allocation4], 1
    %1646 = vsyncpa %s1645, 1
    %1647 = vsyncpa [#allocation7], 1
    %s1648 = scalar_lea.sflag [#allocation7], 1
    %1649 = vsyncpa %s1648, 1
    %1650 = vsyncpa [#allocation10], 1
    %1651 = vsyncpa [#allocation13], 1
    %1652 = vsyncpa [#allocation16], 1
    %1653 = vsyncpa [#allocation5], 1
    %s1654 = scalar_lea.sflag [#allocation5], 1
    %1655 = vsyncpa %s1654, 1
    %1656 = vsyncpa [#allocation20], 1
    %s1657 = scalar_lea.sflag [#allocation20], 1
    %1658 = vsyncpa %s1657, 1
    %1659 = vsyncpa [#allocation23], 1
    %s1660 = scalar_lea.sflag [#allocation23], 1
    %1661 = vsyncpa %s1660, 1

</llo_original>
